<compile_context>
chip_gen: v7x
topology: tpu7x:2x2x1
jax: 0.10.0
libtpu: 0.0.40
codegen_flags: <defaults>
</compile_context>

<pallas_src>
import functools

import jax
import jax.numpy as jnp
from jax import lax
from jax.experimental import pallas as pl
from jax.experimental.pallas import tpu as pltpu


# ----------------------------- Pallas kernel ---------------------------------
def _sym_metric_critic_kernel(x_ref, w0_ref, b0_ref, w1_ref, b1_ref, w2_ref, b2_ref,
                              q_ref, *, precision):
    """Fused f/phi MLP, feature-major: q = -||f(s,a) - phi(g)||_2 for one batch tile.

    x_ref : (obs+goal+act, tile_b)   [obs | goal | act]^T, raw actions (1/act_limit in W0)
    q_ref : (1, tile_b)              lane-dense output row
    """
    def mxu(w_ref, x):
        w = w_ref[...]
        if x.dtype != w.dtype:          # cast only when needed (bf16-weight path)
            x = x.astype(w.dtype)
        return jnp.dot(w, x, preferred_element_type=jnp.float32, precision=precision)

    # Layer 0: (2H, F) @ (F, tile_b); obs/goal/act routing + 1/act_limit folded into W0^T.
    h = mxu(w0_ref, x_ref[...])
    h = jnp.maximum(h + b0_ref[...], 0.0)          # b0 (2H,1) broadcasts over lanes; f32

    # Layer 1: block-diagonal hidden layer (f and phi streams stay independent).
    h = mxu(w1_ref, h)
    h = jnp.maximum(h + b1_ref[...], 0.0)

    # Layer 2 directly produces diff^T = (sa_emb - g_emb)^T   (W2^T = [fw2^T | -pw2^T]).
    d = mxu(w2_ref, h) + b2_ref[...]                # (E, tile_b), f32

    # q = -||diff||_2 : per-lane sublane reduction (XLU) + sqrt, lane-dense store.
    q_ref[...] = -jnp.sqrt(jnp.sum(d * d, axis=0, keepdims=True))


# ---------------------- one-time parameter fusion (off hot path) --------------
def prepare_params(raw_params, *, obs_dim, act_dim, goal_dim, act_limit,
                   weight_dtype=jnp.bfloat16):
    """Fuse f / phi into one block-diagonal feature-major MLP.

    Weights are transposed (W^T), 1/act_limit and the final embedding subtraction are folded
    in.  Weights default to bf16 (MXU-native); biases always stay f32.
    """
    (fw0, fb0, fw1, fb1, fw2, fb2,
     pw0, pb0, pw1, pb1, pw2, pb2) = raw_params
    hid = fw0.shape[1]
    feat = obs_dim + goal_dim + act_dim

    # Layer 0: kernel input columns are x = [obs | goal | act]^T.
    w0t = jnp.zeros((2 * hid, feat), jnp.float32)
    w0t = w0t.at[:hid, :obs_dim].set(fw0[:obs_dim].T)                      # obs  -> f stream
    w0t = w0t.at[:hid, obs_dim + goal_dim:].set((fw0[obs_dim:] / act_limit).T)  # act/lim -> f
    w0t = w0t.at[hid:, obs_dim:obs_dim + goal_dim].set(pw0.T)              # goal -> phi stream
    b0 = jnp.concatenate([fb0, pb0], axis=-1).T                            # (2H, 1)

    # Layer 1: block-diagonal.
    w1t = jnp.zeros((2 * hid, 2 * hid), jnp.float32)
    w1t = w1t.at[:hid, :hid].set(fw1.T)
    w1t = w1t.at[hid:, hid:].set(pw1.T)
    b1 = jnp.concatenate([fb1, pb1], axis=-1).T                            # (2H, 1)

    # Layer 2 emits diff^T = (f_embed - phi_embed)^T directly.
    w2t = jnp.concatenate([fw2.T, -pw2.T], axis=-1)                        # (E, 2H)
    b2 = (fb2 - pb2).T                                                     # (E, 1)

    w0t, w1t, w2t = (w.astype(weight_dtype) for w in (w0t, w1t, w2t))
    b0, b1, b2 = (b.astype(jnp.float32) for b in (b0, b1, b2))
    return (w0t, b0, w1t, b1, w2t, b2)


# ------------------------------ Python wrapper --------------------------------
def sym_metric_critic_forward(pi_inputs, actions, fused_params, *, tile_b_max=2048,
                              precision=None, interpret=False):
    """Returns q_values of shape [B]. `fused_params` comes from prepare_params()."""
    B = pi_inputs.shape[0]
    w0t, b0, w1t, b1, w2t, b2 = fused_params
    feat = w0t.shape[1]

    # Feature-major input [obs | goal | act]^T : (F, B).  Wrapper glue (one fused concat +
    # transpose in XLA); callers with feature-major data can pass it to the kernel directly.
    x_fm = jnp.concatenate([pi_inputs, actions], axis=-1).T

    # Batch tile selection:
    #  * B >  tile_b_max : tile_b_max tiles (rounded to a 128-lane multiple).
    #  * B <= tile_b_max : split into >=2 lane-aligned tiles when possible so
    #    dimension_semantics=("parallel",) engages both v7x TensorCores; tiny B -> one tile.
    def _round_up(v, m):
        return ((v + m - 1) // m) * m

    tile_b_max = max(128, (tile_b_max // 128) * 128)
    if B > tile_b_max:
        tile_b = tile_b_max
    else:
        tile_b = min(B, max(128, _round_up(pl.cdiv(B, 2), 128)))
    grid = (pl.cdiv(B, tile_b),)

    def const_spec(arr):  # weights/biases: one full-extent block, constant across the grid
        return pl.BlockSpec(arr.shape, lambda i: (0, 0))

    q2d = pl.pallas_call(
        functools.partial(_sym_metric_critic_kernel, precision=precision),
        out_shape=jax.ShapeDtypeStruct((1, B), jnp.float32),
        grid=grid,
        in_specs=[
            pl.BlockSpec((feat, tile_b), lambda i: (0, i)),   # batch tile (feature-major)
            const_spec(w0t), const_spec(b0),
            const_spec(w1t), const_spec(b1),
            const_spec(w2t), const_spec(b2),
        ],
        out_specs=pl.BlockSpec((1, tile_b), lambda i: (0, i)),  # lane-dense q row
        compiler_params=pltpu.CompilerParams(
            dimension_semantics=("parallel",),       # batch tiles shard across v7x's 2 TCs
            vmem_limit_bytes=32 * 1024 * 1024),      # explicit; actual footprint ~< 1 MiB
        interpret=interpret,
    )(x_fm, w0t, b0, w1t, b1, w2t, b2)

    return q2d[0]  # (B,)


# -------------------------- deterministic param init --------------------------
def init_params(key, obs_dim, act_dim, goal_dim, hid, embed):
    def linear(k, fan_in, fan_out):
        kw, kb = jax.random.split(k)
        scale = 1.0 / jnp.sqrt(jnp.float32(fan_in))
        w = jax.random.uniform(kw, (fan_in, fan_out), jnp.float32, -scale, scale)
        b = jax.random.uniform(kb, (1, fan_out), jnp.float32, -scale, scale)
        return w, b

    keys = jax.random.split(key, 6)
    fw0, fb0 = linear(keys[0], obs_dim + act_dim, hid)   # f : (obs+act)->hid->hid->embed
    fw1, fb1 = linear(keys[1], hid, hid)
    fw2, fb2 = linear(keys[2], hid, embed)
    pw0, pb0 = linear(keys[3], goal_dim, hid)            # phi : goal->hid->hid->embed
    pw1, pb1 = linear(keys[4], hid, hid)
    pw2, pb2 = linear(keys[5], hid, embed)
    return (fw0, fb0, fw1, fb1, fw2, fb2, pw0, pb0, pw1, pb1, pw2, pb2)


# ------------------------------- reference ------------------------------------
def reference_forward(pi_inputs, actions, raw_params, *, obs_dim, act_limit):
    (fw0, fb0, fw1, fb1, fw2, fb2,
     pw0, pb0, pw1, pb1, pw2, pb2) = raw_params
    obses = pi_inputs[:, :obs_dim]
    goals = pi_inputs[:, obs_dim:]
    sa_in = jnp.concatenate([obses, actions / act_limit], axis=-1)

    dot = functools.partial(jnp.dot, precision=lax.Precision.HIGHEST)
    h = jnp.maximum(dot(sa_in, fw0) + fb0, 0.0)
    h = jnp.maximum(dot(h, fw1) + fb1, 0.0)
    sa_emb = dot(h, fw2) + fb2

    h = jnp.maximum(dot(goals, pw0) + pb0, 0.0)
    h = jnp.maximum(dot(h, pw1) + pb1, 0.0)
    g_emb = dot(h, pw2) + pb2

    return -jnp.linalg.norm(sa_emb - g_emb, axis=-1)


if __name__ == "__main__":
    obs_dim, act_dim, goal_dim = 10, 4, 3
    hid_size, embed_dim = 32, 16          # n_hids = 2 hidden layers
    act_limit = 2.0

    key = jax.random.PRNGKey(0)
    k_params, k_pi, k_act, k_pi2, k_act2 = jax.random.split(key, 5)
    raw = init_params(k_params, obs_dim, act_dim, goal_dim, hid_size, embed_dim)

    fused_f32 = prepare_params(raw, obs_dim=obs_dim, act_dim=act_dim, goal_dim=goal_dim,
                               act_limit=act_limit, weight_dtype=jnp.float32)
    fused_bf16 = prepare_params(raw, obs_dim=obs_dim, act_dim=act_dim, goal_dim=goal_dim,
                                act_limit=act_limit)  # bf16 weights = production default

    # -- small batch, single tile, f32 weights + HIGHEST precision (tight numerics check) --
    B = 8
    pi_inputs = jax.random.normal(k_pi, (B, obs_dim + goal_dim), jnp.float32)
    actions = jax.random.uniform(k_act, (B, act_dim), jnp.float32, -act_limit, act_limit)
    q = sym_metric_critic_forward(pi_inputs, actions, fused_f32,
                                  precision=lax.Precision.HIGHEST)
    jax.block_until_ready(q)
    q_ref = reference_forward(pi_inputs, actions, raw, obs_dim=obs_dim, act_limit=act_limit)
    assert q.shape == (B,)
    assert jnp.allclose(q, q_ref, atol=1e-4, rtol=1e-4), (q, q_ref)

    # -- multi-tile batch grid with a partial last tile (grid=3), tight check --
    B2 = 300
    pi2 = jax.random.normal(k_pi2, (B2, obs_dim + goal_dim), jnp.float32)
    act2 = jax.random.uniform(k_act2, (B2, act_dim), jnp.float32, -act_limit, act_limit)
    q2 = sym_metric_critic_forward(pi2, act2, fused_f32, tile_b_max=128,
                                   precision=lax.Precision.HIGHEST)
    jax.block_until_ready(q2)
    q2_ref = reference_forward(pi2, act2, raw, obs_dim=obs_dim, act_limit=act_limit)
    assert q2.shape == (B2,)
    assert jnp.allclose(q2, q2_ref, atol=1e-4, rtol=1e-4), (q2, q2_ref)

    # -- production path: bf16 weights, default precision, auto tiling (B<=max -> 2 tiles) --
    q3 = sym_metric_critic_forward(pi2, act2, fused_bf16)
    jax.block_until_ready(q3)
    assert q3.shape == (B2,)
    assert jnp.allclose(q3, q2_ref, atol=5e-2, rtol=5e-2), (q3, q2_ref)

    q4 = sym_metric_critic_forward(pi_inputs, actions, fused_bf16)
    jax.block_until_ready(q4)
    assert jnp.allclose(q4, q_ref, atol=5e-2, rtol=5e-2), (q4, q_ref)

    print("KERNEL_OK")
</pallas_src>

<mosaic_0001>
module attributes {stable_mosaic.version = 11 : i64} {
  func.func @_sym_metric_critic_kernel(%arg0: i32, %arg1: memref<17x8xf32, #tpu.memory_space<vmem>>, %arg2: memref<64x17xf32, #tpu.memory_space<vmem>>, %arg3: memref<64x1xf32, #tpu.memory_space<vmem>>, %arg4: memref<64x64xf32, #tpu.memory_space<vmem>>, %arg5: memref<64x1xf32, #tpu.memory_space<vmem>>, %arg6: memref<16x64xf32, #tpu.memory_space<vmem>>, %arg7: memref<16x1xf32, #tpu.memory_space<vmem>>, %arg8: memref<1x8xf32, #tpu.memory_space<vmem>>) attributes {dimension_semantics = [#tpu.dimension_semantics<parallel>], iteration_bounds = array<i64: 1>, scalar_prefetch = 0 : i64, scratch_operands = 0 : i64, tpu.core_type = #tpu.core_type<tc>, window_params = [{transform_indices = @transform_0, window_bounds = array<i64: 17, 8>}, {pipeline_mode = #tpu.pipeline_mode<synchronous>, transform_indices = @transform_1, window_bounds = array<i64: 64, 17>}, {pipeline_mode = #tpu.pipeline_mode<synchronous>, transform_indices = @transform_2, window_bounds = array<i64: 64, 1>}, {pipeline_mode = #tpu.pipeline_mode<synchronous>, transform_indices = @transform_3, window_bounds = array<i64: 64, 64>}, {pipeline_mode = #tpu.pipeline_mode<synchronous>, transform_indices = @transform_4, window_bounds = array<i64: 64, 1>}, {pipeline_mode = #tpu.pipeline_mode<synchronous>, transform_indices = @transform_5, window_bounds = array<i64: 16, 64>}, {pipeline_mode = #tpu.pipeline_mode<synchronous>, transform_indices = @transform_6, window_bounds = array<i64: 16, 1>}, {transform_indices = @transform_7, window_bounds = array<i64: 1, 8>}]} {
    %c0 = arith.constant 0 : index
    %c0_0 = arith.constant 0 : index
    %0 = vector.load %arg1[%c0, %c0_0] : memref<17x8xf32, #tpu.memory_space<vmem>>, vector<17x8xf32>
    %c0_1 = arith.constant 0 : index
    %c0_2 = arith.constant 0 : index
    %1 = vector.load %arg2[%c0_1, %c0_2] : memref<64x17xf32, #tpu.memory_space<vmem>>, vector<64x17xf32>
    %cst = arith.constant dense<0.000000e+00> : vector<64x8xf32>
    %2 = tpu.matmul %1, %0, %cst {dimension_numbers = #tpu.dot_dimension_numbers<[1], [0], [0], [1], [0, 0, 1, 1], [], []>, precision = #tpu.contract_precision<fp32>} : vector<64x17xf32>, vector<17x8xf32>, vector<64x8xf32> -> vector<64x8xf32>
    %c0_3 = arith.constant 0 : index
    %c0_4 = arith.constant 0 : index
    %3 = vector.load %arg3[%c0_3, %c0_4] : memref<64x1xf32, #tpu.memory_space<vmem>>, vector<64x1xf32>
    %4 = vector.broadcast %3 : vector<64x1xf32> to vector<64x8xf32>
    %5 = arith.addf %2, %4 : vector<64x8xf32>
    %cst_5 = arith.constant 0.000000e+00 : f32
    %6 = vector.broadcast %cst_5 : f32 to vector<64x8xf32>
    %7 = arith.maximumf %5, %6 : vector<64x8xf32>
    %c0_6 = arith.constant 0 : index
    %c0_7 = arith.constant 0 : index
    %8 = vector.load %arg4[%c0_6, %c0_7] : memref<64x64xf32, #tpu.memory_space<vmem>>, vector<64x64xf32>
    %cst_8 = arith.constant dense<0.000000e+00> : vector<64x8xf32>
    %9 = tpu.matmul %8, %7, %cst_8 {dimension_numbers = #tpu.dot_dimension_numbers<[1], [0], [0], [1], [0, 0, 1, 1], [], []>, precision = #tpu.contract_precision<fp32>} : vector<64x64xf32>, vector<64x8xf32>, vector<64x8xf32> -> vector<64x8xf32>
    %c0_9 = arith.constant 0 : index
    %c0_10 = arith.constant 0 : index
    %10 = vector.load %arg5[%c0_9, %c0_10] : memref<64x1xf32, #tpu.memory_space<vmem>>, vector<64x1xf32>
    %11 = vector.broadcast %10 : vector<64x1xf32> to vector<64x8xf32>
    %12 = arith.addf %9, %11 : vector<64x8xf32>
    %cst_11 = arith.constant 0.000000e+00 : f32
    %13 = vector.broadcast %cst_11 : f32 to vector<64x8xf32>
    %14 = arith.maximumf %12, %13 : vector<64x8xf32>
    %c0_12 = arith.constant 0 : index
    %c0_13 = arith.constant 0 : index
    %15 = vector.load %arg6[%c0_12, %c0_13] : memref<16x64xf32, #tpu.memory_space<vmem>>, vector<16x64xf32>
    %cst_14 = arith.constant dense<0.000000e+00> : vector<16x8xf32>
    %16 = tpu.matmul %15, %14, %cst_14 {dimension_numbers = #tpu.dot_dimension_numbers<[1], [0], [0], [1], [0, 0, 1, 1], [], []>, precision = #tpu.contract_precision<fp32>} : vector<16x64xf32>, vector<64x8xf32>, vector<16x8xf32> -> vector<16x8xf32>
    %c0_15 = arith.constant 0 : index
    %c0_16 = arith.constant 0 : index
    %17 = vector.load %arg7[%c0_15, %c0_16] : memref<16x1xf32, #tpu.memory_space<vmem>>, vector<16x1xf32>
    %18 = vector.broadcast %17 : vector<16x1xf32> to vector<16x8xf32>
    %19 = arith.addf %16, %18 : vector<16x8xf32>
    %20 = arith.mulf %19, %19 : vector<16x8xf32>
    %cst_17 = arith.constant dense<0.000000e+00> : vector<8xf32>
    %21 = vector.multi_reduction <add>, %20, %cst_17 [0] : vector<16x8xf32> to vector<8xf32>
    %22 = vector.shape_cast %21 : vector<8xf32> to vector<1x8xf32>
    %23 = math.sqrt %22 : vector<1x8xf32>
    %cst_18 = arith.constant 0.000000e+00 : f32
    %24 = vector.broadcast %cst_18 : f32 to vector<1x8xf32>
    %25 = arith.subf %24, %23 : vector<1x8xf32>
    %c0_19 = arith.constant 0 : index
    %c0_20 = arith.constant 0 : index
    %26 = vector.load %arg8[%c0_19, %c0_20] : memref<1x8xf32, #tpu.memory_space<vmem>>, vector<1x8xf32>
    tpu.vector_store %arg8[%c0_19, %c0_20], %25 {strides = array<i32>} : memref<1x8xf32, #tpu.memory_space<vmem>>, vector<1x8xf32>,
    return
  }
  func.func @transform_0(%arg0: i32) -> (i32, i32) {
    %c0_i32 = arith.constant 0 : i32
    %c0_i32_0 = arith.constant 0 : i32
    return %c0_i32, %arg0 : i32, i32
  }
  func.func @transform_1(%arg0: i32) -> (i32, i32) {
    %c0_i32 = arith.constant 0 : i32
    %c0_i32_0 = arith.constant 0 : i32
    %c0_i32_1 = arith.constant 0 : i32
    return %c0_i32, %c0_i32_0 : i32, i32
  }
  func.func @transform_2(%arg0: i32) -> (i32, i32) {
    %c0_i32 = arith.constant 0 : i32
    %c0_i32_0 = arith.constant 0 : i32
    %c0_i32_1 = arith.constant 0 : i32
    return %c0_i32, %c0_i32_0 : i32, i32
  }
  func.func @transform_3(%arg0: i32) -> (i32, i32) {
    %c0_i32 = arith.constant 0 : i32
    %c0_i32_0 = arith.constant 0 : i32
    %c0_i32_1 = arith.constant 0 : i32
    return %c0_i32, %c0_i32_0 : i32, i32
  }
  func.func @transform_4(%arg0: i32) -> (i32, i32) {
    %c0_i32 = arith.constant 0 : i32
    %c0_i32_0 = arith.constant 0 : i32
    %c0_i32_1 = arith.constant 0 : i32
    return %c0_i32, %c0_i32_0 : i32, i32
  }
  func.func @transform_5(%arg0: i32) -> (i32, i32) {
    %c0_i32 = arith.constant 0 : i32
    %c0_i32_0 = arith.constant 0 : i32
    %c0_i32_1 = arith.constant 0 : i32
    return %c0_i32, %c0_i32_0 : i32, i32
  }
  func.func @transform_6(%arg0: i32) -> (i32, i32) {
    %c0_i32 = arith.constant 0 : i32
    %c0_i32_0 = arith.constant 0 : i32
    %c0_i32_1 = arith.constant 0 : i32
    return %c0_i32, %c0_i32_0 : i32, i32
  }
  func.func @transform_7(%arg0: i32) -> (i32, i32) {
    %c0_i32 = arith.constant 0 : i32
    %c0_i32_0 = arith.constant 0 : i32
    return %c0_i32, %arg0 : i32, i32
  }
}

</mosaic_0001>

<llo_original>
// kernel: tpu_custom_call.1
$region0: #{tpu_custom_call.1}
  #allocation0 [shape = 'u32[]', space=smem, size = 0x4, offset = 0x4, fixed_abs, tag = 'smem constant byte address 0x4 - core index']
  #allocation1 [shape = 'u32[144,128]{1,0:T(1,128)}', space=vmem, size = 0x12000, scoped, tag = 'internal scratch']
  %s0 = inlined_call_operand.vmem [shape: f32[17,8], index: 0, kind: input, shape index: {}]
  %s1 = inlined_call_operand.vmem [shape: f32[64,17], index: 1, kind: input, shape index: {}]
  %s2 = inlined_call_operand.vmem [shape: f32[64,1], index: 2, kind: input, shape index: {}]
  %s3 = inlined_call_operand.vmem [shape: f32[64,64], index: 3, kind: input, shape index: {}]
  %s4 = inlined_call_operand.vmem [shape: f32[64,1], index: 4, kind: input, shape index: {}]
  %s5 = inlined_call_operand.vmem [shape: f32[16,64], index: 5, kind: input, shape index: {}]
  %s6 = inlined_call_operand.vmem [shape: f32[16,1], index: 6, kind: input, shape index: {}]
  %s7 = inlined_call_operand.hbm [shape: f32[1,8], index: 7, kind: output, shape index: {}]
  %s8 = sld [smem:[#allocation0]]
  $region38: #{tpu_custom_call.1} parent=0
    _
  %s10 = ssub.s32 1, %s8
  %s11 = scalar_select 0, %s10, %s8
  $region1: #{tpu_custom_call.1} parent=0
    #allocation2 [shape = 'u8[512]{0}', space=vmem, size = 0x400, scoped, tag = 'output window, operand 0, single buffered']
    #allocation3 [shape = 's32[1]{0}', space=sflag, size = 0x4, scoped, tag = 'scoped memory for tpu_custom_call.1']
    %12 = vsyncpa [#allocation3], 0
    // Predicated region
    $region2: #{tpu_custom_call.1} parent=1 // pred_check
      _
    $region3: #{tpu_custom_call.1} parent=1 // pred_check_branch
      %14 = sbr.rel (0) target = $region5
    $region4: #{tpu_custom_call.1} parent=1 // pred_region
      _
    $region5: #{tpu_custom_call.1} parent=1 // pred_fallthru
      _
    // Predicated region
    $region6: #{tpu_custom_call.1} parent=1 // pred_check
      _
    $region7: #{tpu_custom_call.1} parent=1 // pred_check_branch
      %16 = sbr.rel (0) target = $region9
    $region8: #{tpu_custom_call.1} parent=1 // pred_region
      _
    $region9: #{tpu_custom_call.1} parent=1 // pred_fallthru
      _
    // Predicated region
    $region10: #{tpu_custom_call.1} parent=1 // pred_check
      _
    $region11: #{tpu_custom_call.1} parent=1 // pred_check_branch
      %18 = sbr.rel (0) target = $region13
    $region12: #{tpu_custom_call.1} parent=1 // pred_region
      _
    $region13: #{tpu_custom_call.1} parent=1 // pred_fallthru
      _
    // Predicated region
    $region14: #{tpu_custom_call.1} parent=1 // pred_check
      _
    $region15: #{tpu_custom_call.1} parent=1 // pred_check_branch
      %20 = sbr.rel (0) target = $region17
    $region16: #{tpu_custom_call.1} parent=1 // pred_region
      _
    $region17: #{tpu_custom_call.1} parent=1 // pred_fallthru
      _
    // Predicated region
    $region18: #{tpu_custom_call.1} parent=1 // pred_check
      _
    $region19: #{tpu_custom_call.1} parent=1 // pred_check_branch
      %22 = sbr.rel (0) target = $region21
    $region20: #{tpu_custom_call.1} parent=1 // pred_region
      _
    $region21: #{tpu_custom_call.1} parent=1 // pred_fallthru
      _
    // Predicated region
    $region22: #{tpu_custom_call.1} parent=1 // pred_check
      _
    $region23: #{tpu_custom_call.1} parent=1 // pred_check_branch
      %24 = sbr.rel (0) target = $region25
    $region24: #{tpu_custom_call.1} parent=1 // pred_region
      _
    $region25: #{tpu_custom_call.1} parent=1 // pred_fallthru
      _
    // Predicated region
    $region26: #{tpu_custom_call.1} parent=1 // pred_check
      _
    $region27: #{tpu_custom_call.1} parent=1 // pred_check_branch
      %26 = sbr.rel (0) target = $region29
    $region28: #{tpu_custom_call.1} parent=1 // pred_region
      _
    $region29: #{tpu_custom_call.1} parent=1 // pred_fallthru
      _
    %v27 = vld [vmem:[%s0] sm:$0xff]
    %v28 = vld [vmem:[%s0 + $0x8] sm:$0xff]
    %v29 = vld [vmem:[%s0 + $0x10] sm:$0x1]
    %v30 = vld [vmem:[%s1] sm:$0xff]
    %v31 = vld [vmem:[%s1 + $0x8] sm:$0xff]
    %v32 = vld [vmem:[%s1 + $0x10] sm:$0xff]
    %v33 = vld [vmem:[%s1 + $0x18] sm:$0xff]
    %v34 = vld [vmem:[%s1 + $0x20] sm:$0xff]
    %v35 = vld [vmem:[%s1 + $0x28] sm:$0xff]
    %v36 = vld [vmem:[%s1 + $0x30] sm:$0xff]
    %v37 = vld [vmem:[%s1 + $0x38] sm:$0xff]
    %v38 = vld [vmem:[%s2] sm:$0xff]
    %v39 = vld [vmem:[%s2 + $0x8] sm:$0xff]
    %v40 = vld [vmem:[%s2 + $0x10] sm:$0xff]
    %v41 = vld [vmem:[%s2 + $0x18] sm:$0xff]
    %v42 = vld [vmem:[%s2 + $0x20] sm:$0xff]
    %v43 = vld [vmem:[%s2 + $0x28] sm:$0xff]
    %v44 = vld [vmem:[%s2 + $0x30] sm:$0xff]
    %v45 = vld [vmem:[%s2 + $0x38] sm:$0xff]
    %47 = vset.pattern.permute.xlu0 0
    %48 = vperm.xlu0 %47, %v38
    %v49 = vpop.permute.xlu0 %48
    %52 = vset.pattern.permute.xlu0 0
    %53 = vperm.xlu0 %52, %v39
    %v54 = vpop.permute.xlu0 %53
    %57 = vset.pattern.permute.xlu0 0
    %58 = vperm.xlu0 %57, %v40
    %v59 = vpop.permute.xlu0 %58
    %62 = vset.pattern.permute.xlu0 0
    %63 = vperm.xlu0 %62, %v41
    %v64 = vpop.permute.xlu0 %63
    %67 = vset.pattern.permute.xlu0 0
    %68 = vperm.xlu0 %67, %v42
    %v69 = vpop.permute.xlu0 %68
    %72 = vset.pattern.permute.xlu0 0
    %73 = vperm.xlu0 %72, %v43
    %v74 = vpop.permute.xlu0 %73
    %77 = vset.pattern.permute.xlu0 0
    %78 = vperm.xlu0 %77, %v44
    %v79 = vpop.permute.xlu0 %78
    %82 = vset.pattern.permute.xlu0 0
    %83 = vperm.xlu0 %82, %v45
    %v84 = vpop.permute.xlu0 %83
    %vm86 = vcmask 138240
    %v88 = vsel %vm86, %v30, 0
    %v91 = vsel %vm86, %v31, 0
    %v94 = vsel %vm86, %v32, 0
    %v97 = vsel %vm86, %v33, 0
    %v100 = vsel %vm86, %v34, 0
    %v103 = vsel %vm86, %v35, 0
    %v106 = vsel %vm86, %v36, 0
    %v109 = vsel %vm86, %v37, 0
    %vm111 = vcmask 1040384
    %v113 = vsel %vm111, %v29, 0
    %115 = vmatprep.subr.mxu0 0.0
    %v116 = vand.u32 %v27, 4294901760
    %117 = vmatpush1.msra.mxu0 %v116
    %118 = vmatprep.subr.mxu0 0.0
    %v119 = vand.u32 %v28, 4294901760
    %120 = vmatpush1.msra.mxu0 %v119
    %121 = vmatprep.subr.mxu0 0.0
    %v122 = vand.u32 %v113, 4294901760
    %123 = vmatpush1.msra.mxu0 %v122
    %124 = vmatprep.subr.mxu0 0.0
    %125 = vmatpush1.msra.mxu0 0.0
    %126 = vmatprep.subr.mxu0 0.0
    %127 = vmatpush1.msra.mxu0 0.0
    %128 = vmatprep.subr.mxu0 0.0
    %129 = vmatpush1.msra.mxu0 0.0
    %130 = vmatprep.subr.mxu0 0.0
    %131 = vmatpush1.msra.mxu0 0.0
    %132 = vmatprep.subr.mxu0 0.0
    %133 = vmatpush1.msra.mxu0 0.0
    %134 = vmatprep.subr.mxu0 0.0
    %135 = vmatpush1.msra.mxu0 0.0
    %136 = vmatprep.subr.mxu0 0.0
    %137 = vmatpush1.msra.mxu0 0.0
    %138 = vmatprep.subr.mxu0 0.0
    %139 = vmatpush1.msra.mxu0 0.0
    %140 = vmatprep.subr.mxu0 0.0
    %141 = vmatpush1.msra.mxu0 0.0
    %142 = vmatprep.subr.mxu0 0.0
    %143 = vmatpush1.msra.mxu0 0.0
    %144 = vmatprep.subr.mxu0 0.0
    %145 = vmatpush1.msra.mxu0 0.0
    %146 = vmatprep.subr.mxu0 0.0
    %147 = vmatpush1.msra.mxu0 0.0
    %148 = vmatprep.subr.mxu0 0.0
    %149 = vmatpush1.msra.mxu0 0.0
    %150 = vmatprep.subr.mxu0 0.0
    %151 = vmatpush1.msra.mxu0 0.0
    %152 = vmatprep.subr.mxu0 0.0
    %153 = vmatpush1.msra.mxu0 0.0
    %154 = vmatprep.subr.mxu0 0.0
    %155 = vmatpush1.msra.mxu0 0.0
    %156 = vmatprep.subr.mxu0 0.0
    %157 = vmatpush1.msra.mxu0 0.0
    %158 = vmatprep.subr.mxu0 0.0
    %159 = vmatpush1.msra.mxu0 0.0
    %160 = vmatprep.subr.mxu0 0.0
    %161 = vmatpush1.msra.mxu0 0.0
    %162 = vmatprep.subr.mxu0 0.0
    %163 = vmatpush1.msra.mxu0 0.0
    %164 = vmatprep.subr.mxu0 0.0
    %165 = vmatpush1.msra.mxu0 0.0
    %166 = vmatprep.subr.mxu0 0.0
    %167 = vmatpush1.msra.mxu0 0.0
    %168 = vmatprep.subr.mxu0 0.0
    %169 = vmatpush1.msra.mxu0 0.0
    %170 = vmatprep.subr.mxu0 0.0
    %171 = vmatpush1.msra.mxu0 0.0
    %172 = vmatprep.subr.mxu0 0.0
    %173 = vmatpush1.msra.mxu0 0.0
    %174 = vmatprep.subr.mxu0 0.0
    %175 = vmatpush1.msra.mxu0 0.0
    %176 = vmatprep.subr.mxu0 0.0
    %177 = vmatpush1.msra.mxu0 0.0
    %178 = vmatprep.subr.mxu0 0.0
    %179 = vmatpush1.msra.mxu0 0.0
    %180 = vmatprep.subr.mxu0 0.0
    %181 = vmatpush1.msra.mxu0 0.0
    %182 = vmatprep.mubr.f32.mxu0 0.0
    %v183 = vand.u32 %v88, 4294901760
    %v184 = vsub.f32 %v88, %v183
    %v185 = vand.u32 %v184, 4294901760
    %v186 = vsub.f32 %v184, %v185
    %v187 = vand.u32 %v186, 4294901760
    %188 = vmatmul.mubr.f32.gmra.mrb[0].mxu0 %v187
    %v189 = vpop.f32.mrb[0].mxu0
    %v190 = vadd.f32 %v49, %v189
    %v191 = vpop.f32.mrb[0].mxu0
    %192 = vmatprep.mubr.f32.mxu0 0.0
    %v193 = vand.u32 %v91, 4294901760
    %v194 = vsub.f32 %v91, %v193
    %v195 = vand.u32 %v194, 4294901760
    %v196 = vsub.f32 %v194, %v195
    %v197 = vand.u32 %v196, 4294901760
    %198 = vmatmul.mubr.f32.gmra.mrb[0].mxu0 %v197
    %v199 = vpop.f32.mrb[0].mxu0
    %v200 = vadd.f32 %v54, %v199
    %v201 = vpop.f32.mrb[0].mxu0
    %202 = vmatprep.mubr.f32.mxu0 0.0
    %v203 = vand.u32 %v94, 4294901760
    %v204 = vsub.f32 %v94, %v203
    %v205 = vand.u32 %v204, 4294901760
    %v206 = vsub.f32 %v204, %v205
    %v207 = vand.u32 %v206, 4294901760
    %208 = vmatmul.mubr.f32.gmra.mrb[0].mxu0 %v207
    %v209 = vpop.f32.mrb[0].mxu0
    %v210 = vadd.f32 %v59, %v209
    %v211 = vpop.f32.mrb[0].mxu0
    %212 = vmatprep.mubr.f32.mxu0 0.0
    %v213 = vand.u32 %v97, 4294901760
    %v214 = vsub.f32 %v97, %v213
    %v215 = vand.u32 %v214, 4294901760
    %v216 = vsub.f32 %v214, %v215
    %v217 = vand.u32 %v216, 4294901760
    %218 = vmatmul.mubr.f32.gmra.mrb[0].mxu0 %v217
    %v219 = vpop.f32.mrb[0].mxu0
    %v220 = vadd.f32 %v64, %v219
    %v221 = vpop.f32.mrb[0].mxu0
    %222 = vmatprep.mubr.f32.mxu0 0.0
    %v223 = vand.u32 %v100, 4294901760
    %v224 = vsub.f32 %v100, %v223
    %v225 = vand.u32 %v224, 4294901760
    %v226 = vsub.f32 %v224, %v225
    %v227 = vand.u32 %v226, 4294901760
    %228 = vmatmul.mubr.f32.gmra.mrb[0].mxu0 %v227
    %v229 = vpop.f32.mrb[0].mxu0
    %v230 = vadd.f32 %v69, %v229
    %v231 = vpop.f32.mrb[0].mxu0
    %232 = vmatprep.mubr.f32.mxu0 0.0
    %v233 = vand.u32 %v103, 4294901760
    %v234 = vsub.f32 %v103, %v233
    %v235 = vand.u32 %v234, 4294901760
    %v236 = vsub.f32 %v234, %v235
    %v237 = vand.u32 %v236, 4294901760
    %238 = vmatmul.mubr.f32.gmra.mrb[0].mxu0 %v237
    %v239 = vpop.f32.mrb[0].mxu0
    %v240 = vadd.f32 %v74, %v239
    %v241 = vpop.f32.mrb[0].mxu0
    %242 = vmatprep.mubr.f32.mxu0 0.0
    %v243 = vand.u32 %v106, 4294901760
    %v244 = vsub.f32 %v106, %v243
    %v245 = vand.u32 %v244, 4294901760
    %v246 = vsub.f32 %v244, %v245
    %v247 = vand.u32 %v246, 4294901760
    %248 = vmatmul.mubr.f32.gmra.mrb[0].mxu0 %v247
    %v249 = vpop.f32.mrb[0].mxu0
    %v250 = vadd.f32 %v79, %v249
    %v251 = vpop.f32.mrb[0].mxu0
    %252 = vmatprep.mubr.f32.mxu0 0.0
    %v253 = vand.u32 %v109, 4294901760
    %v254 = vsub.f32 %v109, %v253
    %v255 = vand.u32 %v254, 4294901760
    %v256 = vsub.f32 %v254, %v255
    %v257 = vand.u32 %v256, 4294901760
    %258 = vmatmul.mubr.f32.gmra.mrb[0].mxu0 %v257
    %v259 = vpop.f32.mrb[0].mxu0
    %v260 = vadd.f32 %v84, %v259
    %v261 = vpop.f32.mrb[0].mxu0
    %262 = vdwg.mxu0
    %263 = vmatprep.subr.mxu0 0.0
    %v264 = vand.u32 %v27, 4294901760
    %v265 = vsub.f32 %v27, %v264
    %v266 = vand.u32 %v265, 4294901760
    %v267 = vsub.f32 %v265, %v266
    %v268 = vand.u32 %v267, 4294901760
    %269 = vmatpush1.msra.mxu0 %v268
    %270 = vmatprep.subr.mxu0 0.0
    %v271 = vand.u32 %v28, 4294901760
    %v272 = vsub.f32 %v28, %v271
    %v273 = vand.u32 %v272, 4294901760
    %v274 = vsub.f32 %v272, %v273
    %v275 = vand.u32 %v274, 4294901760
    %276 = vmatpush1.msra.mxu0 %v275
    %277 = vmatprep.subr.mxu0 0.0
    %v278 = vand.u32 %v113, 4294901760
    %v279 = vsub.f32 %v113, %v278
    %v280 = vand.u32 %v279, 4294901760
    %v281 = vsub.f32 %v279, %v280
    %v282 = vand.u32 %v281, 4294901760
    %283 = vmatpush1.msra.mxu0 %v282
    %284 = vmatprep.subr.mxu0 0.0
    %285 = vmatpush1.msra.mxu0 0.0
    %286 = vmatprep.subr.mxu0 0.0
    %287 = vmatpush1.msra.mxu0 0.0
    %288 = vmatprep.subr.mxu0 0.0
    %289 = vmatpush1.msra.mxu0 0.0
    %290 = vmatprep.subr.mxu0 0.0
    %291 = vmatpush1.msra.mxu0 0.0
    %292 = vmatprep.subr.mxu0 0.0
    %293 = vmatpush1.msra.mxu0 0.0
    %294 = vmatprep.subr.mxu0 0.0
    %295 = vmatpush1.msra.mxu0 0.0
    %296 = vmatprep.subr.mxu0 0.0
    %297 = vmatpush1.msra.mxu0 0.0
    %298 = vmatprep.subr.mxu0 0.0
    %299 = vmatpush1.msra.mxu0 0.0
    %300 = vmatprep.subr.mxu0 0.0
    %301 = vmatpush1.msra.mxu0 0.0
    %302 = vmatprep.subr.mxu0 0.0
    %303 = vmatpush1.msra.mxu0 0.0
    %304 = vmatprep.subr.mxu0 0.0
    %305 = vmatpush1.msra.mxu0 0.0
    %306 = vmatprep.subr.mxu0 0.0
    %307 = vmatpush1.msra.mxu0 0.0
    %308 = vmatprep.subr.mxu0 0.0
    %309 = vmatpush1.msra.mxu0 0.0
    %310 = vmatprep.subr.mxu0 0.0
    %311 = vmatpush1.msra.mxu0 0.0
    %312 = vmatprep.subr.mxu0 0.0
    %313 = vmatpush1.msra.mxu0 0.0
    %314 = vmatprep.subr.mxu0 0.0
    %315 = vmatpush1.msra.mxu0 0.0
    %316 = vmatprep.subr.mxu0 0.0
    %317 = vmatpush1.msra.mxu0 0.0
    %318 = vmatprep.subr.mxu0 0.0
    %319 = vmatpush1.msra.mxu0 0.0
    %320 = vmatprep.subr.mxu0 0.0
    %321 = vmatpush1.msra.mxu0 0.0
    %322 = vmatprep.subr.mxu0 0.0
    %323 = vmatpush1.msra.mxu0 0.0
    %324 = vmatprep.subr.mxu0 0.0
    %325 = vmatpush1.msra.mxu0 0.0
    %326 = vmatprep.subr.mxu0 0.0
    %327 = vmatpush1.msra.mxu0 0.0
    %328 = vmatprep.subr.mxu0 0.0
    %329 = vmatpush1.msra.mxu0 0.0
    %330 = vmatprep.subr.mxu0 0.0
    %331 = vmatpush1.msra.mxu0 0.0
    %332 = vmatprep.subr.mxu0 0.0
    %333 = vmatpush1.msra.mxu0 0.0
    %334 = vmatprep.subr.mxu0 0.0
    %335 = vmatpush1.msra.mxu0 0.0
    %336 = vmatprep.subr.mxu0 0.0
    %337 = vmatpush1.msra.mxu0 0.0
    %338 = vmatprep.subr.mxu0 0.0
    %339 = vmatpush1.msra.mxu0 0.0
    %340 = vmatprep.subr.mxu0 0.0
    %341 = vmatpush1.msra.mxu0 0.0
    %342 = vmatprep.mubr.f32.mxu0 0.0
    %v343 = vand.u32 %v88, 4294901760
    %344 = vmatmul.mubr.f32.gmra.mrb[0].mxu0 %v343
    %v345 = vpop.f32.mrb[0].mxu0
    %v346 = vadd.f32 %v190, %v345
    %v347 = vpop.f32.mrb[0].mxu0
    %348 = vmatprep.mubr.f32.mxu0 0.0
    %v349 = vand.u32 %v91, 4294901760
    %350 = vmatmul.mubr.f32.gmra.mrb[0].mxu0 %v349
    %v351 = vpop.f32.mrb[0].mxu0
    %v352 = vadd.f32 %v200, %v351
    %v353 = vpop.f32.mrb[0].mxu0
    %354 = vmatprep.mubr.f32.mxu0 0.0
    %v355 = vand.u32 %v94, 4294901760
    %356 = vmatmul.mubr.f32.gmra.mrb[0].mxu0 %v355
    %v357 = vpop.f32.mrb[0].mxu0
    %v358 = vadd.f32 %v210, %v357
    %v359 = vpop.f32.mrb[0].mxu0
    %360 = vmatprep.mubr.f32.mxu0 0.0
    %v361 = vand.u32 %v97, 4294901760
    %362 = vmatmul.mubr.f32.gmra.mrb[0].mxu0 %v361
    %v363 = vpop.f32.mrb[0].mxu0
    %v364 = vadd.f32 %v220, %v363
    %v365 = vpop.f32.mrb[0].mxu0
    %366 = vmatprep.mubr.f32.mxu0 0.0
    %v367 = vand.u32 %v100, 4294901760
    %368 = vmatmul.mubr.f32.gmra.mrb[0].mxu0 %v367
    %v369 = vpop.f32.mrb[0].mxu0
    %v370 = vadd.f32 %v230, %v369
    %v371 = vpop.f32.mrb[0].mxu0
    %372 = vmatprep.mubr.f32.mxu0 0.0
    %v373 = vand.u32 %v103, 4294901760
    %374 = vmatmul.mubr.f32.gmra.mrb[0].mxu0 %v373
    %v375 = vpop.f32.mrb[0].mxu0
    %v376 = vadd.f32 %v240, %v375
    %v377 = vpop.f32.mrb[0].mxu0
    %378 = vmatprep.mubr.f32.mxu0 0.0
    %v379 = vand.u32 %v106, 4294901760
    %380 = vmatmul.mubr.f32.gmra.mrb[0].mxu0 %v379
    %v381 = vpop.f32.mrb[0].mxu0
    %v382 = vadd.f32 %v250, %v381
    %v383 = vpop.f32.mrb[0].mxu0
    %384 = vmatprep.mubr.f32.mxu0 0.0
    %v385 = vand.u32 %v109, 4294901760
    %386 = vmatmul.mubr.f32.gmra.mrb[0].mxu0 %v385
    %v387 = vpop.f32.mrb[0].mxu0
    %v388 = vadd.f32 %v260, %v387
    %v389 = vpop.f32.mrb[0].mxu0
    %390 = vdwg.mxu0
    %391 = vmatprep.subr.mxu0 0.0
    %v392 = vand.u32 %v27, 4294901760
    %v393 = vsub.f32 %v27, %v392
    %394 = vmatpush1.msra.mxu0 %v393
    %395 = vmatprep.subr.mxu0 0.0
    %v396 = vand.u32 %v28, 4294901760
    %v397 = vsub.f32 %v28, %v396
    %398 = vmatpush1.msra.mxu0 %v397
    %399 = vmatprep.subr.mxu0 0.0
    %v400 = vand.u32 %v113, 4294901760
    %v401 = vsub.f32 %v113, %v400
    %402 = vmatpush1.msra.mxu0 %v401
    %403 = vmatprep.subr.mxu0 0.0
    %404 = vmatpush1.msra.mxu0 0.0
    %405 = vmatprep.subr.mxu0 0.0
    %406 = vmatpush1.msra.mxu0 0.0
    %407 = vmatprep.subr.mxu0 0.0
    %408 = vmatpush1.msra.mxu0 0.0
    %409 = vmatprep.subr.mxu0 0.0
    %410 = vmatpush1.msra.mxu0 0.0
    %411 = vmatprep.subr.mxu0 0.0
    %412 = vmatpush1.msra.mxu0 0.0
    %413 = vmatprep.subr.mxu0 0.0
    %414 = vmatpush1.msra.mxu0 0.0
    %415 = vmatprep.subr.mxu0 0.0
    %416 = vmatpush1.msra.mxu0 0.0
    %417 = vmatprep.subr.mxu0 0.0
    %418 = vmatpush1.msra.mxu0 0.0
    %419 = vmatprep.subr.mxu0 0.0
    %420 = vmatpush1.msra.mxu0 0.0
    %421 = vmatprep.subr.mxu0 0.0
    %422 = vmatpush1.msra.mxu0 0.0
    %423 = vmatprep.subr.mxu0 0.0
    %424 = vmatpush1.msra.mxu0 0.0
    %425 = vmatprep.subr.mxu0 0.0
    %426 = vmatpush1.msra.mxu0 0.0
    %427 = vmatprep.subr.mxu0 0.0
    %428 = vmatpush1.msra.mxu0 0.0
    %429 = vmatprep.subr.mxu0 0.0
    %430 = vmatpush1.msra.mxu0 0.0
    %431 = vmatprep.subr.mxu0 0.0
    %432 = vmatpush1.msra.mxu0 0.0
    %433 = vmatprep.subr.mxu0 0.0
    %434 = vmatpush1.msra.mxu0 0.0
    %435 = vmatprep.subr.mxu0 0.0
    %436 = vmatpush1.msra.mxu0 0.0
    %437 = vmatprep.subr.mxu0 0.0
    %438 = vmatpush1.msra.mxu0 0.0
    %439 = vmatprep.subr.mxu0 0.0
    %440 = vmatpush1.msra.mxu0 0.0
    %441 = vmatprep.subr.mxu0 0.0
    %442 = vmatpush1.msra.mxu0 0.0
    %443 = vmatprep.subr.mxu0 0.0
    %444 = vmatpush1.msra.mxu0 0.0
    %445 = vmatprep.subr.mxu0 0.0
    %446 = vmatpush1.msra.mxu0 0.0
    %447 = vmatprep.subr.mxu0 0.0
    %448 = vmatpush1.msra.mxu0 0.0
    %449 = vmatprep.subr.mxu0 0.0
    %450 = vmatpush1.msra.mxu0 0.0
    %451 = vmatprep.subr.mxu0 0.0
    %452 = vmatpush1.msra.mxu0 0.0
    %453 = vmatprep.subr.mxu0 0.0
    %454 = vmatpush1.msra.mxu0 0.0
    %455 = vmatprep.subr.mxu0 0.0
    %456 = vmatpush1.msra.mxu0 0.0
    %457 = vmatprep.subr.mxu0 0.0
    %458 = vmatpush1.msra.mxu0 0.0
    %459 = vmatprep.subr.mxu0 0.0
    %460 = vmatpush1.msra.mxu0 0.0
    %461 = vmatprep.mubr.f32.mxu0 0.0
    %v462 = vand.u32 %v88, 4294901760
    %v463 = vsub.f32 %v88, %v462
    %464 = vmatmul.mubr.f32.gmra.mrb[0].mxu0 %v463
    %v465 = vpop.f32.mrb[0].mxu0
    %v466 = vadd.f32 %v346, %v465
    %v467 = vpop.f32.mrb[0].mxu0
    %468 = vmatprep.mubr.f32.mxu0 0.0
    %v469 = vand.u32 %v91, 4294901760
    %v470 = vsub.f32 %v91, %v469
    %471 = vmatmul.mubr.f32.gmra.mrb[0].mxu0 %v470
    %v472 = vpop.f32.mrb[0].mxu0
    %v473 = vadd.f32 %v352, %v472
    %v474 = vpop.f32.mrb[0].mxu0
    %475 = vmatprep.mubr.f32.mxu0 0.0
    %v476 = vand.u32 %v94, 4294901760
    %v477 = vsub.f32 %v94, %v476
    %478 = vmatmul.mubr.f32.gmra.mrb[0].mxu0 %v477
    %v479 = vpop.f32.mrb[0].mxu0
    %v480 = vadd.f32 %v358, %v479
    %v481 = vpop.f32.mrb[0].mxu0
    %482 = vmatprep.mubr.f32.mxu0 0.0
    %v483 = vand.u32 %v97, 4294901760
    %v484 = vsub.f32 %v97, %v483
    %485 = vmatmul.mubr.f32.gmra.mrb[0].mxu0 %v484
    %v486 = vpop.f32.mrb[0].mxu0
    %v487 = vadd.f32 %v364, %v486
    %v488 = vpop.f32.mrb[0].mxu0
    %489 = vmatprep.mubr.f32.mxu0 0.0
    %v490 = vand.u32 %v100, 4294901760
    %v491 = vsub.f32 %v100, %v490
    %492 = vmatmul.mubr.f32.gmra.mrb[0].mxu0 %v491
    %v493 = vpop.f32.mrb[0].mxu0
    %v494 = vadd.f32 %v370, %v493
    %v495 = vpop.f32.mrb[0].mxu0
    %496 = vmatprep.mubr.f32.mxu0 0.0
    %v497 = vand.u32 %v103, 4294901760
    %v498 = vsub.f32 %v103, %v497
    %499 = vmatmul.mubr.f32.gmra.mrb[0].mxu0 %v498
    %v500 = vpop.f32.mrb[0].mxu0
    %v501 = vadd.f32 %v376, %v500
    %v502 = vpop.f32.mrb[0].mxu0
    %503 = vmatprep.mubr.f32.mxu0 0.0
    %v504 = vand.u32 %v106, 4294901760
    %v505 = vsub.f32 %v106, %v504
    %506 = vmatmul.mubr.f32.gmra.mrb[0].mxu0 %v505
    %v507 = vpop.f32.mrb[0].mxu0
    %v508 = vadd.f32 %v382, %v507
    %v509 = vpop.f32.mrb[0].mxu0
    %510 = vmatprep.mubr.f32.mxu0 0.0
    %v511 = vand.u32 %v109, 4294901760
    %v512 = vsub.f32 %v109, %v511
    %513 = vmatmul.mubr.f32.gmra.mrb[0].mxu0 %v512
    %v514 = vpop.f32.mrb[0].mxu0
    %v515 = vadd.f32 %v388, %v514
    %v516 = vpop.f32.mrb[0].mxu0
    %517 = vdwg.mxu0
    %518 = vmatprep.subr.mxu0 0.0
    %v519 = vand.u32 %v27, 4294901760
    %520 = vmatpush1.msra.mxu0 %v519
    %521 = vmatprep.subr.mxu0 0.0
    %v522 = vand.u32 %v28, 4294901760
    %523 = vmatpush1.msra.mxu0 %v522
    %524 = vmatprep.subr.mxu0 0.0
    %v525 = vand.u32 %v113, 4294901760
    %526 = vmatpush1.msra.mxu0 %v525
    %527 = vmatprep.subr.mxu0 0.0
    %528 = vmatpush1.msra.mxu0 0.0
    %529 = vmatprep.subr.mxu0 0.0
    %530 = vmatpush1.msra.mxu0 0.0
    %531 = vmatprep.subr.mxu0 0.0
    %532 = vmatpush1.msra.mxu0 0.0
    %533 = vmatprep.subr.mxu0 0.0
    %534 = vmatpush1.msra.mxu0 0.0
    %535 = vmatprep.subr.mxu0 0.0
    %536 = vmatpush1.msra.mxu0 0.0
    %537 = vmatprep.subr.mxu0 0.0
    %538 = vmatpush1.msra.mxu0 0.0
    %539 = vmatprep.subr.mxu0 0.0
    %540 = vmatpush1.msra.mxu0 0.0
    %541 = vmatprep.subr.mxu0 0.0
    %542 = vmatpush1.msra.mxu0 0.0
    %543 = vmatprep.subr.mxu0 0.0
    %544 = vmatpush1.msra.mxu0 0.0
    %545 = vmatprep.subr.mxu0 0.0
    %546 = vmatpush1.msra.mxu0 0.0
    %547 = vmatprep.subr.mxu0 0.0
    %548 = vmatpush1.msra.mxu0 0.0
    %549 = vmatprep.subr.mxu0 0.0
    %550 = vmatpush1.msra.mxu0 0.0
    %551 = vmatprep.subr.mxu0 0.0
    %552 = vmatpush1.msra.mxu0 0.0
    %553 = vmatprep.subr.mxu0 0.0
    %554 = vmatpush1.msra.mxu0 0.0
    %555 = vmatprep.subr.mxu0 0.0
    %556 = vmatpush1.msra.mxu0 0.0
    %557 = vmatprep.subr.mxu0 0.0
    %558 = vmatpush1.msra.mxu0 0.0
    %559 = vmatprep.subr.mxu0 0.0
    %560 = vmatpush1.msra.mxu0 0.0
    %561 = vmatprep.subr.mxu0 0.0
    %562 = vmatpush1.msra.mxu0 0.0
    %563 = vmatprep.subr.mxu0 0.0
    %564 = vmatpush1.msra.mxu0 0.0
    %565 = vmatprep.subr.mxu0 0.0
    %566 = vmatpush1.msra.mxu0 0.0
    %567 = vmatprep.subr.mxu0 0.0
    %568 = vmatpush1.msra.mxu0 0.0
    %569 = vmatprep.subr.mxu0 0.0
    %570 = vmatpush1.msra.mxu0 0.0
    %571 = vmatprep.subr.mxu0 0.0
    %572 = vmatpush1.msra.mxu0 0.0
    %573 = vmatprep.subr.mxu0 0.0
    %574 = vmatpush1.msra.mxu0 0.0
    %575 = vmatprep.subr.mxu0 0.0
    %576 = vmatpush1.msra.mxu0 0.0
    %577 = vmatprep.subr.mxu0 0.0
    %578 = vmatpush1.msra.mxu0 0.0
    %579 = vmatprep.subr.mxu0 0.0
    %580 = vmatpush1.msra.mxu0 0.0
    %581 = vmatprep.subr.mxu0 0.0
    %582 = vmatpush1.msra.mxu0 0.0
    %583 = vmatprep.subr.mxu0 0.0
    %584 = vmatpush1.msra.mxu0 0.0
    %585 = vmatprep.mubr.f32.mxu0 0.0
    %v586 = vand.u32 %v88, 4294901760
    %v587 = vsub.f32 %v88, %v586
    %v588 = vand.u32 %v587, 4294901760
    %589 = vmatmul.mubr.f32.gmra.mrb[0].mxu0 %v588
    %v590 = vpop.f32.mrb[0].mxu0
    %v591 = vadd.f32 %v466, %v590
    %v592 = vpop.f32.mrb[0].mxu0
    %593 = vmatprep.mubr.f32.mxu0 0.0
    %v594 = vand.u32 %v91, 4294901760
    %v595 = vsub.f32 %v91, %v594
    %v596 = vand.u32 %v595, 4294901760
    %597 = vmatmul.mubr.f32.gmra.mrb[0].mxu0 %v596
    %v598 = vpop.f32.mrb[0].mxu0
    %v599 = vadd.f32 %v473, %v598
    %v600 = vpop.f32.mrb[0].mxu0
    %601 = vmatprep.mubr.f32.mxu0 0.0
    %v602 = vand.u32 %v94, 4294901760
    %v603 = vsub.f32 %v94, %v602
    %v604 = vand.u32 %v603, 4294901760
    %605 = vmatmul.mubr.f32.gmra.mrb[0].mxu0 %v604
    %v606 = vpop.f32.mrb[0].mxu0
    %v607 = vadd.f32 %v480, %v606
    %v608 = vpop.f32.mrb[0].mxu0
    %609 = vmatprep.mubr.f32.mxu0 0.0
    %v610 = vand.u32 %v97, 4294901760
    %v611 = vsub.f32 %v97, %v610
    %v612 = vand.u32 %v611, 4294901760
    %613 = vmatmul.mubr.f32.gmra.mrb[0].mxu0 %v612
    %v614 = vpop.f32.mrb[0].mxu0
    %v615 = vadd.f32 %v487, %v614
    %v616 = vpop.f32.mrb[0].mxu0
    %617 = vmatprep.mubr.f32.mxu0 0.0
    %v618 = vand.u32 %v100, 4294901760
    %v619 = vsub.f32 %v100, %v618
    %v620 = vand.u32 %v619, 4294901760
    %621 = vmatmul.mubr.f32.gmra.mrb[0].mxu0 %v620
    %v622 = vpop.f32.mrb[0].mxu0
    %v623 = vadd.f32 %v494, %v622
    %v624 = vpop.f32.mrb[0].mxu0
    %625 = vmatprep.mubr.f32.mxu0 0.0
    %v626 = vand.u32 %v103, 4294901760
    %v627 = vsub.f32 %v103, %v626
    %v628 = vand.u32 %v627, 4294901760
    %629 = vmatmul.mubr.f32.gmra.mrb[0].mxu0 %v628
    %v630 = vpop.f32.mrb[0].mxu0
    %v631 = vadd.f32 %v501, %v630
    %v632 = vpop.f32.mrb[0].mxu0
    %633 = vmatprep.mubr.f32.mxu0 0.0
    %v634 = vand.u32 %v106, 4294901760
    %v635 = vsub.f32 %v106, %v634
    %v636 = vand.u32 %v635, 4294901760
    %637 = vmatmul.mubr.f32.gmra.mrb[0].mxu0 %v636
    %v638 = vpop.f32.mrb[0].mxu0
    %v639 = vadd.f32 %v508, %v638
    %v640 = vpop.f32.mrb[0].mxu0
    %641 = vmatprep.mubr.f32.mxu0 0.0
    %v642 = vand.u32 %v109, 4294901760
    %v643 = vsub.f32 %v109, %v642
    %v644 = vand.u32 %v643, 4294901760
    %645 = vmatmul.mubr.f32.gmra.mrb[0].mxu0 %v644
    %v646 = vpop.f32.mrb[0].mxu0
    %v647 = vadd.f32 %v515, %v646
    %v648 = vpop.f32.mrb[0].mxu0
    %649 = vdwg.mxu0
    %650 = vmatprep.subr.mxu0 0.0
    %v651 = vand.u32 %v27, 4294901760
    %v652 = vsub.f32 %v27, %v651
    %v653 = vand.u32 %v652, 4294901760
    %654 = vmatpush1.msra.mxu0 %v653
    %655 = vmatprep.subr.mxu0 0.0
    %v656 = vand.u32 %v28, 4294901760
    %v657 = vsub.f32 %v28, %v656
    %v658 = vand.u32 %v657, 4294901760
    %659 = vmatpush1.msra.mxu0 %v658
    %660 = vmatprep.subr.mxu0 0.0
    %v661 = vand.u32 %v113, 4294901760
    %v662 = vsub.f32 %v113, %v661
    %v663 = vand.u32 %v662, 4294901760
    %664 = vmatpush1.msra.mxu0 %v663
    %665 = vmatprep.subr.mxu0 0.0
    %666 = vmatpush1.msra.mxu0 0.0
    %667 = vmatprep.subr.mxu0 0.0
    %668 = vmatpush1.msra.mxu0 0.0
    %669 = vmatprep.subr.mxu0 0.0
    %670 = vmatpush1.msra.mxu0 0.0
    %671 = vmatprep.subr.mxu0 0.0
    %672 = vmatpush1.msra.mxu0 0.0
    %673 = vmatprep.subr.mxu0 0.0
    %674 = vmatpush1.msra.mxu0 0.0
    %675 = vmatprep.subr.mxu0 0.0
    %676 = vmatpush1.msra.mxu0 0.0
    %677 = vmatprep.subr.mxu0 0.0
    %678 = vmatpush1.msra.mxu0 0.0
    %679 = vmatprep.subr.mxu0 0.0
    %680 = vmatpush1.msra.mxu0 0.0
    %681 = vmatprep.subr.mxu0 0.0
    %682 = vmatpush1.msra.mxu0 0.0
    %683 = vmatprep.subr.mxu0 0.0
    %684 = vmatpush1.msra.mxu0 0.0
    %685 = vmatprep.subr.mxu0 0.0
    %686 = vmatpush1.msra.mxu0 0.0
    %687 = vmatprep.subr.mxu0 0.0
    %688 = vmatpush1.msra.mxu0 0.0
    %689 = vmatprep.subr.mxu0 0.0
    %690 = vmatpush1.msra.mxu0 0.0
    %691 = vmatprep.subr.mxu0 0.0
    %692 = vmatpush1.msra.mxu0 0.0
    %693 = vmatprep.subr.mxu0 0.0
    %694 = vmatpush1.msra.mxu0 0.0
    %695 = vmatprep.subr.mxu0 0.0
    %696 = vmatpush1.msra.mxu0 0.0
    %697 = vmatprep.subr.mxu0 0.0
    %698 = vmatpush1.msra.mxu0 0.0
    %699 = vmatprep.subr.mxu0 0.0
    %700 = vmatpush1.msra.mxu0 0.0
    %701 = vmatprep.subr.mxu0 0.0
    %702 = vmatpush1.msra.mxu0 0.0
    %703 = vmatprep.subr.mxu0 0.0
    %704 = vmatpush1.msra.mxu0 0.0
    %705 = vmatprep.subr.mxu0 0.0
    %706 = vmatpush1.msra.mxu0 0.0
    %707 = vmatprep.subr.mxu0 0.0
    %708 = vmatpush1.msra.mxu0 0.0
    %709 = vmatprep.subr.mxu0 0.0
    %710 = vmatpush1.msra.mxu0 0.0
    %711 = vmatprep.subr.mxu0 0.0
    %712 = vmatpush1.msra.mxu0 0.0
    %713 = vmatprep.subr.mxu0 0.0
    %714 = vmatpush1.msra.mxu0 0.0
    %715 = vmatprep.subr.mxu0 0.0
    %716 = vmatpush1.msra.mxu0 0.0
    %717 = vmatprep.subr.mxu0 0.0
    %718 = vmatpush1.msra.mxu0 0.0
    %719 = vmatprep.subr.mxu0 0.0
    %720 = vmatpush1.msra.mxu0 0.0
    %721 = vmatprep.subr.mxu0 0.0
    %722 = vmatpush1.msra.mxu0 0.0
    %723 = vmatprep.mubr.f32.mxu0 0.0
    %v724 = vand.u32 %v88, 4294901760
    %725 = vmatmul.mubr.f32.gmra.mrb[0].mxu0 %v724
    %v726 = vpop.f32.mrb[0].mxu0
    %v727 = vadd.f32 %v591, %v726
    %v728 = vpop.f32.mrb[0].mxu0
    %729 = vmatprep.mubr.f32.mxu0 0.0
    %v730 = vand.u32 %v91, 4294901760
    %731 = vmatmul.mubr.f32.gmra.mrb[0].mxu0 %v730
    %v732 = vpop.f32.mrb[0].mxu0
    %v733 = vadd.f32 %v599, %v732
    %v734 = vpop.f32.mrb[0].mxu0
    %735 = vmatprep.mubr.f32.mxu0 0.0
    %v736 = vand.u32 %v94, 4294901760
    %737 = vmatmul.mubr.f32.gmra.mrb[0].mxu0 %v736
    %v738 = vpop.f32.mrb[0].mxu0
    %v739 = vadd.f32 %v607, %v738
    %v740 = vpop.f32.mrb[0].mxu0
    %741 = vmatprep.mubr.f32.mxu0 0.0
    %v742 = vand.u32 %v97, 4294901760
    %743 = vmatmul.mubr.f32.gmra.mrb[0].mxu0 %v742
    %v744 = vpop.f32.mrb[0].mxu0
    %v745 = vadd.f32 %v615, %v744
    %v746 = vpop.f32.mrb[0].mxu0
    %747 = vmatprep.mubr.f32.mxu0 0.0
    %v748 = vand.u32 %v100, 4294901760
    %749 = vmatmul.mubr.f32.gmra.mrb[0].mxu0 %v748
    %v750 = vpop.f32.mrb[0].mxu0
    %v751 = vadd.f32 %v623, %v750
    %v752 = vpop.f32.mrb[0].mxu0
    %753 = vmatprep.mubr.f32.mxu0 0.0
    %v754 = vand.u32 %v103, 4294901760
    %755 = vmatmul.mubr.f32.gmra.mrb[0].mxu0 %v754
    %v756 = vpop.f32.mrb[0].mxu0
    %v757 = vadd.f32 %v631, %v756
    %v758 = vpop.f32.mrb[0].mxu0
    %759 = vmatprep.mubr.f32.mxu0 0.0
    %v760 = vand.u32 %v106, 4294901760
    %761 = vmatmul.mubr.f32.gmra.mrb[0].mxu0 %v760
    %v762 = vpop.f32.mrb[0].mxu0
    %v763 = vadd.f32 %v639, %v762
    %v764 = vpop.f32.mrb[0].mxu0
    %765 = vmatprep.mubr.f32.mxu0 0.0
    %v766 = vand.u32 %v109, 4294901760
    %767 = vmatmul.mubr.f32.gmra.mrb[0].mxu0 %v766
    %v768 = vpop.f32.mrb[0].mxu0
    %v769 = vadd.f32 %v647, %v768
    %v770 = vpop.f32.mrb[0].mxu0
    %771 = vdwg.mxu0
    %772 = vmatprep.subr.mxu0 0.0
    %v773 = vand.u32 %v27, 4294901760
    %774 = vmatpush1.msra.mxu0 %v773
    %775 = vmatprep.subr.mxu0 0.0
    %v776 = vand.u32 %v28, 4294901760
    %777 = vmatpush1.msra.mxu0 %v776
    %778 = vmatprep.subr.mxu0 0.0
    %v779 = vand.u32 %v113, 4294901760
    %780 = vmatpush1.msra.mxu0 %v779
    %781 = vmatprep.subr.mxu0 0.0
    %782 = vmatpush1.msra.mxu0 0.0
    %783 = vmatprep.subr.mxu0 0.0
    %784 = vmatpush1.msra.mxu0 0.0
    %785 = vmatprep.subr.mxu0 0.0
    %786 = vmatpush1.msra.mxu0 0.0
    %787 = vmatprep.subr.mxu0 0.0
    %788 = vmatpush1.msra.mxu0 0.0
    %789 = vmatprep.subr.mxu0 0.0
    %790 = vmatpush1.msra.mxu0 0.0
    %791 = vmatprep.subr.mxu0 0.0
    %792 = vmatpush1.msra.mxu0 0.0
    %793 = vmatprep.subr.mxu0 0.0
    %794 = vmatpush1.msra.mxu0 0.0
    %795 = vmatprep.subr.mxu0 0.0
    %796 = vmatpush1.msra.mxu0 0.0
    %797 = vmatprep.subr.mxu0 0.0
    %798 = vmatpush1.msra.mxu0 0.0
    %799 = vmatprep.subr.mxu0 0.0
    %800 = vmatpush1.msra.mxu0 0.0
    %801 = vmatprep.subr.mxu0 0.0
    %802 = vmatpush1.msra.mxu0 0.0
    %803 = vmatprep.subr.mxu0 0.0
    %804 = vmatpush1.msra.mxu0 0.0
    %805 = vmatprep.subr.mxu0 0.0
    %806 = vmatpush1.msra.mxu0 0.0
    %807 = vmatprep.subr.mxu0 0.0
    %808 = vmatpush1.msra.mxu0 0.0
    %809 = vmatprep.subr.mxu0 0.0
    %810 = vmatpush1.msra.mxu0 0.0
    %811 = vmatprep.subr.mxu0 0.0
    %812 = vmatpush1.msra.mxu0 0.0
    %813 = vmatprep.subr.mxu0 0.0
    %814 = vmatpush1.msra.mxu0 0.0
    %815 = vmatprep.subr.mxu0 0.0
    %816 = vmatpush1.msra.mxu0 0.0
    %817 = vmatprep.subr.mxu0 0.0
    %818 = vmatpush1.msra.mxu0 0.0
    %819 = vmatprep.subr.mxu0 0.0
    %820 = vmatpush1.msra.mxu0 0.0
    %821 = vmatprep.subr.mxu0 0.0
    %822 = vmatpush1.msra.mxu0 0.0
    %823 = vmatprep.subr.mxu0 0.0
    %824 = vmatpush1.msra.mxu0 0.0
    %825 = vmatprep.subr.mxu0 0.0
    %826 = vmatpush1.msra.mxu0 0.0
    %827 = vmatprep.subr.mxu0 0.0
    %828 = vmatpush1.msra.mxu0 0.0
    %829 = vmatprep.subr.mxu0 0.0
    %830 = vmatpush1.msra.mxu0 0.0
    %831 = vmatprep.subr.mxu0 0.0
    %832 = vmatpush1.msra.mxu0 0.0
    %833 = vmatprep.subr.mxu0 0.0
    %834 = vmatpush1.msra.mxu0 0.0
    %835 = vmatprep.subr.mxu0 0.0
    %836 = vmatpush1.msra.mxu0 0.0
    %837 = vmatprep.subr.mxu0 0.0
    %838 = vmatpush1.msra.mxu0 0.0
    %839 = vmatprep.mubr.f32.mxu0 0.0
    %v840 = vand.u32 %v88, 4294901760
    %841 = vmatmul.mubr.f32.gmra.mrb[0].mxu0 %v840
    %v842 = vpop.f32.mrb[0].mxu0
    %v843 = vadd.f32 %v727, %v842
    %v844 = vpop.f32.mrb[0].mxu0
    %845 = vmatprep.mubr.f32.mxu0 0.0
    %v846 = vand.u32 %v91, 4294901760
    %847 = vmatmul.mubr.f32.gmra.mrb[0].mxu0 %v846
    %v848 = vpop.f32.mrb[0].mxu0
    %v849 = vadd.f32 %v733, %v848
    %v850 = vpop.f32.mrb[0].mxu0
    %851 = vmatprep.mubr.f32.mxu0 0.0
    %v852 = vand.u32 %v94, 4294901760
    %853 = vmatmul.mubr.f32.gmra.mrb[0].mxu0 %v852
    %v854 = vpop.f32.mrb[0].mxu0
    %v855 = vadd.f32 %v739, %v854
    %v856 = vpop.f32.mrb[0].mxu0
    %857 = vmatprep.mubr.f32.mxu0 0.0
    %v858 = vand.u32 %v97, 4294901760
    %859 = vmatmul.mubr.f32.gmra.mrb[0].mxu0 %v858
    %v860 = vpop.f32.mrb[0].mxu0
    %v861 = vadd.f32 %v745, %v860
    %v862 = vpop.f32.mrb[0].mxu0
    %863 = vmatprep.mubr.f32.mxu0 0.0
    %v864 = vand.u32 %v100, 4294901760
    %865 = vmatmul.mubr.f32.gmra.mrb[0].mxu0 %v864
    %v866 = vpop.f32.mrb[0].mxu0
    %v867 = vadd.f32 %v751, %v866
    %v868 = vpop.f32.mrb[0].mxu0
    %869 = vmatprep.mubr.f32.mxu0 0.0
    %v870 = vand.u32 %v103, 4294901760
    %871 = vmatmul.mubr.f32.gmra.mrb[0].mxu0 %v870
    %v872 = vpop.f32.mrb[0].mxu0
    %v873 = vadd.f32 %v757, %v872
    %v874 = vpop.f32.mrb[0].mxu0
    %875 = vmatprep.mubr.f32.mxu0 0.0
    %v876 = vand.u32 %v106, 4294901760
    %877 = vmatmul.mubr.f32.gmra.mrb[0].mxu0 %v876
    %v878 = vpop.f32.mrb[0].mxu0
    %v879 = vadd.f32 %v763, %v878
    %v880 = vpop.f32.mrb[0].mxu0
    %881 = vmatprep.mubr.f32.mxu0 0.0
    %v882 = vand.u32 %v109, 4294901760
    %883 = vmatmul.mubr.f32.gmra.mrb[0].mxu0 %v882
    %v884 = vpop.f32.mrb[0].mxu0
    %v885 = vadd.f32 %v769, %v884
    %v886 = vpop.f32.mrb[0].mxu0
    %887 = vdwg.mxu0
    %v888 = vmax.f32 %v843, 0.0
    %v889 = vmax.f32 %v849, 0.0
    %v890 = vmax.f32 %v855, 0.0
    %v891 = vmax.f32 %v861, 0.0
    %v892 = vmax.f32 %v867, 0.0
    %v893 = vmax.f32 %v873, 0.0
    %v894 = vmax.f32 %v879, 0.0
    %v895 = vmax.f32 %v885, 0.0
    %v896 = vld [vmem:[%s3] sm:$0xff]
    %v897 = vld [vmem:[%s3 + $0x8] sm:$0xff]
    %v898 = vld [vmem:[%s3 + $0x10] sm:$0xff]
    %v899 = vld [vmem:[%s3 + $0x18] sm:$0xff]
    %v900 = vld [vmem:[%s3 + $0x20] sm:$0xff]
    %v901 = vld [vmem:[%s3 + $0x28] sm:$0xff]
    %v902 = vld [vmem:[%s3 + $0x30] sm:$0xff]
    %v903 = vld [vmem:[%s3 + $0x38] sm:$0xff]
    %v904 = vld [vmem:[%s4] sm:$0xff]
    %v905 = vld [vmem:[%s4 + $0x8] sm:$0xff]
    %v906 = vld [vmem:[%s4 + $0x10] sm:$0xff]
    %v907 = vld [vmem:[%s4 + $0x18] sm:$0xff]
    %v908 = vld [vmem:[%s4 + $0x20] sm:$0xff]
    %v909 = vld [vmem:[%s4 + $0x28] sm:$0xff]
    %v910 = vld [vmem:[%s4 + $0x30] sm:$0xff]
    %v911 = vld [vmem:[%s4 + $0x38] sm:$0xff]
    %913 = vset.pattern.permute.xlu0 0
    %914 = vperm.xlu0 %913, %v904
    %v915 = vpop.permute.xlu0 %914
    %918 = vset.pattern.permute.xlu0 0
    %919 = vperm.xlu0 %918, %v905
    %v920 = vpop.permute.xlu0 %919
    %923 = vset.pattern.permute.xlu0 0
    %924 = vperm.xlu0 %923, %v906
    %v925 = vpop.permute.xlu0 %924
    %928 = vset.pattern.permute.xlu0 0
    %929 = vperm.xlu0 %928, %v907
    %v930 = vpop.permute.xlu0 %929
    %933 = vset.pattern.permute.xlu0 0
    %934 = vperm.xlu0 %933, %v908
    %v935 = vpop.permute.xlu0 %934
    %938 = vset.pattern.permute.xlu0 0
    %939 = vperm.xlu0 %938, %v909
    %v940 = vpop.permute.xlu0 %939
    %943 = vset.pattern.permute.xlu0 0
    %944 = vperm.xlu0 %943, %v910
    %v945 = vpop.permute.xlu0 %944
    %948 = vset.pattern.permute.xlu0 0
    %949 = vperm.xlu0 %948, %v911
    %v950 = vpop.permute.xlu0 %949
    %vm952 = vcmask 523264
    %v954 = vsel %vm952, %v896, 0
    %v957 = vsel %vm952, %v897, 0
    %v960 = vsel %vm952, %v898, 0
    %v963 = vsel %vm952, %v899, 0
    %v966 = vsel %vm952, %v900, 0
    %v969 = vsel %vm952, %v901, 0
    %v972 = vsel %vm952, %v902, 0
    %v975 = vsel %vm952, %v903, 0
    %977 = vmatprep.subr.mxu0 0.0
    %v978 = vand.u32 %v888, 4294901760
    %979 = vmatpush1.msra.mxu0 %v978
    %980 = vmatprep.subr.mxu0 0.0
    %v981 = vand.u32 %v889, 4294901760
    %982 = vmatpush1.msra.mxu0 %v981
    %983 = vmatprep.subr.mxu0 0.0
    %v984 = vand.u32 %v890, 4294901760
    %985 = vmatpush1.msra.mxu0 %v984
    %986 = vmatprep.subr.mxu0 0.0
    %v987 = vand.u32 %v891, 4294901760
    %988 = vmatpush1.msra.mxu0 %v987
    %989 = vmatprep.subr.mxu0 0.0
    %v990 = vand.u32 %v892, 4294901760
    %991 = vmatpush1.msra.mxu0 %v990
    %992 = vmatprep.subr.mxu0 0.0
    %v993 = vand.u32 %v893, 4294901760
    %994 = vmatpush1.msra.mxu0 %v993
    %995 = vmatprep.subr.mxu0 0.0
    %v996 = vand.u32 %v894, 4294901760
    %997 = vmatpush1.msra.mxu0 %v996
    %998 = vmatprep.subr.mxu0 0.0
    %v999 = vand.u32 %v895, 4294901760
    %1000 = vmatpush1.msra.mxu0 %v999
    %1001 = vmatprep.subr.mxu0 0.0
    %1002 = vmatpush1.msra.mxu0 0.0
    %1003 = vmatprep.subr.mxu0 0.0
    %1004 = vmatpush1.msra.mxu0 0.0
    %1005 = vmatprep.subr.mxu0 0.0
    %1006 = vmatpush1.msra.mxu0 0.0
    %1007 = vmatprep.subr.mxu0 0.0
    %1008 = vmatpush1.msra.mxu0 0.0
    %1009 = vmatprep.subr.mxu0 0.0
    %1010 = vmatpush1.msra.mxu0 0.0
    %1011 = vmatprep.subr.mxu0 0.0
    %1012 = vmatpush1.msra.mxu0 0.0
    %1013 = vmatprep.subr.mxu0 0.0
    %1014 = vmatpush1.msra.mxu0 0.0
    %1015 = vmatprep.subr.mxu0 0.0
    %1016 = vmatpush1.msra.mxu0 0.0
    %1017 = vmatprep.subr.mxu0 0.0
    %1018 = vmatpush1.msra.mxu0 0.0
    %1019 = vmatprep.subr.mxu0 0.0
    %1020 = vmatpush1.msra.mxu0 0.0
    %1021 = vmatprep.subr.mxu0 0.0
    %1022 = vmatpush1.msra.mxu0 0.0
    %1023 = vmatprep.subr.mxu0 0.0
    %1024 = vmatpush1.msra.mxu0 0.0
    %1025 = vmatprep.subr.mxu0 0.0
    %1026 = vmatpush1.msra.mxu0 0.0
    %1027 = vmatprep.subr.mxu0 0.0
    %1028 = vmatpush1.msra.mxu0 0.0
    %1029 = vmatprep.subr.mxu0 0.0
    %1030 = vmatpush1.msra.mxu0 0.0
    %1031 = vmatprep.subr.mxu0 0.0
    %1032 = vmatpush1.msra.mxu0 0.0
    %1033 = vmatprep.subr.mxu0 0.0
    %1034 = vmatpush1.msra.mxu0 0.0
    %1035 = vmatprep.subr.mxu0 0.0
    %1036 = vmatpush1.msra.mxu0 0.0
    %1037 = vmatprep.subr.mxu0 0.0
    %1038 = vmatpush1.msra.mxu0 0.0
    %1039 = vmatprep.subr.mxu0 0.0
    %1040 = vmatpush1.msra.mxu0 0.0
    %1041 = vmatprep.subr.mxu0 0.0
    %1042 = vmatpush1.msra.mxu0 0.0
    %1043 = vmatprep.subr.mxu0 0.0
    %1044 = vmatpush1.msra.mxu0 0.0
    %1045 = vmatprep.subr.mxu0 0.0
    %1046 = vmatpush1.msra.mxu0 0.0
    %1047 = vmatprep.subr.mxu0 0.0
    %1048 = vmatpush1.msra.mxu0 0.0
    %1049 = vmatprep.mubr.f32.mxu0 0.0
    %v1050 = vand.u32 %v954, 4294901760
    %v1051 = vsub.f32 %v954, %v1050
    %v1052 = vand.u32 %v1051, 4294901760
    %v1053 = vsub.f32 %v1051, %v1052
    %v1054 = vand.u32 %v1053, 4294901760
    %1055 = vmatmul.mubr.f32.gmra.mrb[0].mxu0 %v1054
    %v1056 = vpop.f32.mrb[0].mxu0
    %v1057 = vadd.f32 %v915, %v1056
    %v1058 = vpop.f32.mrb[0].mxu0
    %1059 = vmatprep.mubr.f32.mxu0 0.0
    %v1060 = vand.u32 %v957, 4294901760
    %v1061 = vsub.f32 %v957, %v1060
    %v1062 = vand.u32 %v1061, 4294901760
    %v1063 = vsub.f32 %v1061, %v1062
    %v1064 = vand.u32 %v1063, 4294901760
    %1065 = vmatmul.mubr.f32.gmra.mrb[0].mxu0 %v1064
    %v1066 = vpop.f32.mrb[0].mxu0
    %v1067 = vadd.f32 %v920, %v1066
    %v1068 = vpop.f32.mrb[0].mxu0
    %1069 = vmatprep.mubr.f32.mxu0 0.0
    %v1070 = vand.u32 %v960, 4294901760
    %v1071 = vsub.f32 %v960, %v1070
    %v1072 = vand.u32 %v1071, 4294901760
    %v1073 = vsub.f32 %v1071, %v1072
    %v1074 = vand.u32 %v1073, 4294901760
    %1075 = vmatmul.mubr.f32.gmra.mrb[0].mxu0 %v1074
    %v1076 = vpop.f32.mrb[0].mxu0
    %v1077 = vadd.f32 %v925, %v1076
    %v1078 = vpop.f32.mrb[0].mxu0
    %1079 = vmatprep.mubr.f32.mxu0 0.0
    %v1080 = vand.u32 %v963, 4294901760
    %v1081 = vsub.f32 %v963, %v1080
    %v1082 = vand.u32 %v1081, 4294901760
    %v1083 = vsub.f32 %v1081, %v1082
    %v1084 = vand.u32 %v1083, 4294901760
    %1085 = vmatmul.mubr.f32.gmra.mrb[0].mxu0 %v1084
    %v1086 = vpop.f32.mrb[0].mxu0
    %v1087 = vadd.f32 %v930, %v1086
    %v1088 = vpop.f32.mrb[0].mxu0
    %1089 = vmatprep.mubr.f32.mxu0 0.0
    %v1090 = vand.u32 %v966, 4294901760
    %v1091 = vsub.f32 %v966, %v1090
    %v1092 = vand.u32 %v1091, 4294901760
    %v1093 = vsub.f32 %v1091, %v1092
    %v1094 = vand.u32 %v1093, 4294901760
    %1095 = vmatmul.mubr.f32.gmra.mrb[0].mxu0 %v1094
    %v1096 = vpop.f32.mrb[0].mxu0
    %v1097 = vadd.f32 %v935, %v1096
    %v1098 = vpop.f32.mrb[0].mxu0
    %1099 = vmatprep.mubr.f32.mxu0 0.0
    %v1100 = vand.u32 %v969, 4294901760
    %v1101 = vsub.f32 %v969, %v1100
    %v1102 = vand.u32 %v1101, 4294901760
    %v1103 = vsub.f32 %v1101, %v1102
    %v1104 = vand.u32 %v1103, 4294901760
    %1105 = vmatmul.mubr.f32.gmra.mrb[0].mxu0 %v1104
    %v1106 = vpop.f32.mrb[0].mxu0
    %v1107 = vadd.f32 %v940, %v1106
    %v1108 = vpop.f32.mrb[0].mxu0
    %1109 = vmatprep.mubr.f32.mxu0 0.0
    %v1110 = vand.u32 %v972, 4294901760
    %v1111 = vsub.f32 %v972, %v1110
    %v1112 = vand.u32 %v1111, 4294901760
    %v1113 = vsub.f32 %v1111, %v1112
    %v1114 = vand.u32 %v1113, 4294901760
    %1115 = vmatmul.mubr.f32.gmra.mrb[0].mxu0 %v1114
    %v1116 = vpop.f32.mrb[0].mxu0
    %v1117 = vadd.f32 %v945, %v1116
    %v1118 = vpop.f32.mrb[0].mxu0
    %1119 = vmatprep.mubr.f32.mxu0 0.0
    %v1120 = vand.u32 %v975, 4294901760
    %v1121 = vsub.f32 %v975, %v1120
    %v1122 = vand.u32 %v1121, 4294901760
    %v1123 = vsub.f32 %v1121, %v1122
    %v1124 = vand.u32 %v1123, 4294901760
    %1125 = vmatmul.mubr.f32.gmra.mrb[0].mxu0 %v1124
    %v1126 = vpop.f32.mrb[0].mxu0
    %v1127 = vadd.f32 %v950, %v1126
    %v1128 = vpop.f32.mrb[0].mxu0
    %1129 = vdwg.mxu0
    %1130 = vmatprep.subr.mxu0 0.0
    %v1131 = vand.u32 %v888, 4294901760
    %v1132 = vsub.f32 %v888, %v1131
    %v1133 = vand.u32 %v1132, 4294901760
    %v1134 = vsub.f32 %v1132, %v1133
    %v1135 = vand.u32 %v1134, 4294901760
    %1136 = vmatpush1.msra.mxu0 %v1135
    %1137 = vmatprep.subr.mxu0 0.0
    %v1138 = vand.u32 %v889, 4294901760
    %v1139 = vsub.f32 %v889, %v1138
    %v1140 = vand.u32 %v1139, 4294901760
    %v1141 = vsub.f32 %v1139, %v1140
    %v1142 = vand.u32 %v1141, 4294901760
    %1143 = vmatpush1.msra.mxu0 %v1142
    %1144 = vmatprep.subr.mxu0 0.0
    %v1145 = vand.u32 %v890, 4294901760
    %v1146 = vsub.f32 %v890, %v1145
    %v1147 = vand.u32 %v1146, 4294901760
    %v1148 = vsub.f32 %v1146, %v1147
    %v1149 = vand.u32 %v1148, 4294901760
    %1150 = vmatpush1.msra.mxu0 %v1149
    %1151 = vmatprep.subr.mxu0 0.0
    %v1152 = vand.u32 %v891, 4294901760
    %v1153 = vsub.f32 %v891, %v1152
    %v1154 = vand.u32 %v1153, 4294901760
    %v1155 = vsub.f32 %v1153, %v1154
    %v1156 = vand.u32 %v1155, 4294901760
    %1157 = vmatpush1.msra.mxu0 %v1156
    %1158 = vmatprep.subr.mxu0 0.0
    %v1159 = vand.u32 %v892, 4294901760
    %v1160 = vsub.f32 %v892, %v1159
    %v1161 = vand.u32 %v1160, 4294901760
    %v1162 = vsub.f32 %v1160, %v1161
    %v1163 = vand.u32 %v1162, 4294901760
    %1164 = vmatpush1.msra.mxu0 %v1163
    %1165 = vmatprep.subr.mxu0 0.0
    %v1166 = vand.u32 %v893, 4294901760
    %v1167 = vsub.f32 %v893, %v1166
    %v1168 = vand.u32 %v1167, 4294901760
    %v1169 = vsub.f32 %v1167, %v1168
    %v1170 = vand.u32 %v1169, 4294901760
    %1171 = vmatpush1.msra.mxu0 %v1170
    %1172 = vmatprep.subr.mxu0 0.0
    %v1173 = vand.u32 %v894, 4294901760
    %v1174 = vsub.f32 %v894, %v1173
    %v1175 = vand.u32 %v1174, 4294901760
    %v1176 = vsub.f32 %v1174, %v1175
    %v1177 = vand.u32 %v1176, 4294901760
    %1178 = vmatpush1.msra.mxu0 %v1177
    %1179 = vmatprep.subr.mxu0 0.0
    %v1180 = vand.u32 %v895, 4294901760
    %v1181 = vsub.f32 %v895, %v1180
    %v1182 = vand.u32 %v1181, 4294901760
    %v1183 = vsub.f32 %v1181, %v1182
    %v1184 = vand.u32 %v1183, 4294901760
    %1185 = vmatpush1.msra.mxu0 %v1184
    %1186 = vmatprep.subr.mxu0 0.0
    %1187 = vmatpush1.msra.mxu0 0.0
    %1188 = vmatprep.subr.mxu0 0.0
    %1189 = vmatpush1.msra.mxu0 0.0
    %1190 = vmatprep.subr.mxu0 0.0
    %1191 = vmatpush1.msra.mxu0 0.0
    %1192 = vmatprep.subr.mxu0 0.0
    %1193 = vmatpush1.msra.mxu0 0.0
    %1194 = vmatprep.subr.mxu0 0.0
    %1195 = vmatpush1.msra.mxu0 0.0
    %1196 = vmatprep.subr.mxu0 0.0
    %1197 = vmatpush1.msra.mxu0 0.0
    %1198 = vmatprep.subr.mxu0 0.0
    %1199 = vmatpush1.msra.mxu0 0.0
    %1200 = vmatprep.subr.mxu0 0.0
    %1201 = vmatpush1.msra.mxu0 0.0
    %1202 = vmatprep.subr.mxu0 0.0
    %1203 = vmatpush1.msra.mxu0 0.0
    %1204 = vmatprep.subr.mxu0 0.0
    %1205 = vmatpush1.msra.mxu0 0.0
    %1206 = vmatprep.subr.mxu0 0.0
    %1207 = vmatpush1.msra.mxu0 0.0
    %1208 = vmatprep.subr.mxu0 0.0
    %1209 = vmatpush1.msra.mxu0 0.0
    %1210 = vmatprep.subr.mxu0 0.0
    %1211 = vmatpush1.msra.mxu0 0.0
    %1212 = vmatprep.subr.mxu0 0.0
    %1213 = vmatpush1.msra.mxu0 0.0
    %1214 = vmatprep.subr.mxu0 0.0
    %1215 = vmatpush1.msra.mxu0 0.0
    %1216 = vmatprep.subr.mxu0 0.0
    %1217 = vmatpush1.msra.mxu0 0.0
    %1218 = vmatprep.subr.mxu0 0.0
    %1219 = vmatpush1.msra.mxu0 0.0
    %1220 = vmatprep.subr.mxu0 0.0
    %1221 = vmatpush1.msra.mxu0 0.0
    %1222 = vmatprep.subr.mxu0 0.0
    %1223 = vmatpush1.msra.mxu0 0.0
    %1224 = vmatprep.subr.mxu0 0.0
    %1225 = vmatpush1.msra.mxu0 0.0
    %1226 = vmatprep.subr.mxu0 0.0
    %1227 = vmatpush1.msra.mxu0 0.0
    %1228 = vmatprep.subr.mxu0 0.0
    %1229 = vmatpush1.msra.mxu0 0.0
    %1230 = vmatprep.subr.mxu0 0.0
    %1231 = vmatpush1.msra.mxu0 0.0
    %1232 = vmatprep.subr.mxu0 0.0
    %1233 = vmatpush1.msra.mxu0 0.0
    %1234 = vmatprep.mubr.f32.mxu0 0.0
    %v1235 = vand.u32 %v954, 4294901760
    %1236 = vmatmul.mubr.f32.gmra.mrb[0].mxu0 %v1235
    %v1237 = vpop.f32.mrb[0].mxu0
    %v1238 = vadd.f32 %v1057, %v1237
    %v1239 = vpop.f32.mrb[0].mxu0
    %1240 = vmatprep.mubr.f32.mxu0 0.0
    %v1241 = vand.u32 %v957, 4294901760
    %1242 = vmatmul.mubr.f32.gmra.mrb[0].mxu0 %v1241
    %v1243 = vpop.f32.mrb[0].mxu0
    %v1244 = vadd.f32 %v1067, %v1243
    %v1245 = vpop.f32.mrb[0].mxu0
    %1246 = vmatprep.mubr.f32.mxu0 0.0
    %v1247 = vand.u32 %v960, 4294901760
    %1248 = vmatmul.mubr.f32.gmra.mrb[0].mxu0 %v1247
    %v1249 = vpop.f32.mrb[0].mxu0
    %v1250 = vadd.f32 %v1077, %v1249
    %v1251 = vpop.f32.mrb[0].mxu0
    %1252 = vmatprep.mubr.f32.mxu0 0.0
    %v1253 = vand.u32 %v963, 4294901760
    %1254 = vmatmul.mubr.f32.gmra.mrb[0].mxu0 %v1253
    %v1255 = vpop.f32.mrb[0].mxu0
    %v1256 = vadd.f32 %v1087, %v1255
    %v1257 = vpop.f32.mrb[0].mxu0
    %1258 = vmatprep.mubr.f32.mxu0 0.0
    %v1259 = vand.u32 %v966, 4294901760
    %1260 = vmatmul.mubr.f32.gmra.mrb[0].mxu0 %v1259
    %v1261 = vpop.f32.mrb[0].mxu0
    %v1262 = vadd.f32 %v1097, %v1261
    %v1263 = vpop.f32.mrb[0].mxu0
    %1264 = vmatprep.mubr.f32.mxu0 0.0
    %v1265 = vand.u32 %v969, 4294901760
    %1266 = vmatmul.mubr.f32.gmra.mrb[0].mxu0 %v1265
    %v1267 = vpop.f32.mrb[0].mxu0
    %v1268 = vadd.f32 %v1107, %v1267
    %v1269 = vpop.f32.mrb[0].mxu0
    %1270 = vmatprep.mubr.f32.mxu0 0.0
    %v1271 = vand.u32 %v972, 4294901760
    %1272 = vmatmul.mubr.f32.gmra.mrb[0].mxu0 %v1271
    %v1273 = vpop.f32.mrb[0].mxu0
    %v1274 = vadd.f32 %v1117, %v1273
    %v1275 = vpop.f32.mrb[0].mxu0
    %1276 = vmatprep.mubr.f32.mxu0 0.0
    %v1277 = vand.u32 %v975, 4294901760
    %1278 = vmatmul.mubr.f32.gmra.mrb[0].mxu0 %v1277
    %v1279 = vpop.f32.mrb[0].mxu0
    %v1280 = vadd.f32 %v1127, %v1279
    %v1281 = vpop.f32.mrb[0].mxu0
    %1282 = vdwg.mxu0
    %1283 = vmatprep.subr.mxu0 0.0
    %v1284 = vand.u32 %v888, 4294901760
    %v1285 = vsub.f32 %v888, %v1284
    %1286 = vmatpush1.msra.mxu0 %v1285
    %1287 = vmatprep.subr.mxu0 0.0
    %v1288 = vand.u32 %v889, 4294901760
    %v1289 = vsub.f32 %v889, %v1288
    %1290 = vmatpush1.msra.mxu0 %v1289
    %1291 = vmatprep.subr.mxu0 0.0
    %v1292 = vand.u32 %v890, 4294901760
    %v1293 = vsub.f32 %v890, %v1292
    %1294 = vmatpush1.msra.mxu0 %v1293
    %1295 = vmatprep.subr.mxu0 0.0
    %v1296 = vand.u32 %v891, 4294901760
    %v1297 = vsub.f32 %v891, %v1296
    %1298 = vmatpush1.msra.mxu0 %v1297
    %1299 = vmatprep.subr.mxu0 0.0
    %v1300 = vand.u32 %v892, 4294901760
    %v1301 = vsub.f32 %v892, %v1300
    %1302 = vmatpush1.msra.mxu0 %v1301
    %1303 = vmatprep.subr.mxu0 0.0
    %v1304 = vand.u32 %v893, 4294901760
    %v1305 = vsub.f32 %v893, %v1304
    %1306 = vmatpush1.msra.mxu0 %v1305
    %1307 = vmatprep.subr.mxu0 0.0
    %v1308 = vand.u32 %v894, 4294901760
    %v1309 = vsub.f32 %v894, %v1308
    %1310 = vmatpush1.msra.mxu0 %v1309
    %1311 = vmatprep.subr.mxu0 0.0
    %v1312 = vand.u32 %v895, 4294901760
    %v1313 = vsub.f32 %v895, %v1312
    %1314 = vmatpush1.msra.mxu0 %v1313
    %1315 = vmatprep.subr.mxu0 0.0
    %1316 = vmatpush1.msra.mxu0 0.0
    %1317 = vmatprep.subr.mxu0 0.0
    %1318 = vmatpush1.msra.mxu0 0.0
    %1319 = vmatprep.subr.mxu0 0.0
    %1320 = vmatpush1.msra.mxu0 0.0
    %1321 = vmatprep.subr.mxu0 0.0
    %1322 = vmatpush1.msra.mxu0 0.0
    %1323 = vmatprep.subr.mxu0 0.0
    %1324 = vmatpush1.msra.mxu0 0.0
    %1325 = vmatprep.subr.mxu0 0.0
    %1326 = vmatpush1.msra.mxu0 0.0
    %1327 = vmatprep.subr.mxu0 0.0
    %1328 = vmatpush1.msra.mxu0 0.0
    %1329 = vmatprep.subr.mxu0 0.0
    %1330 = vmatpush1.msra.mxu0 0.0
    %1331 = vmatprep.subr.mxu0 0.0
    %1332 = vmatpush1.msra.mxu0 0.0
    %1333 = vmatprep.subr.mxu0 0.0
    %1334 = vmatpush1.msra.mxu0 0.0
    %1335 = vmatprep.subr.mxu0 0.0
    %1336 = vmatpush1.msra.mxu0 0.0
    %1337 = vmatprep.subr.mxu0 0.0
    %1338 = vmatpush1.msra.mxu0 0.0
    %1339 = vmatprep.subr.mxu0 0.0
    %1340 = vmatpush1.msra.mxu0 0.0
    %1341 = vmatprep.subr.mxu0 0.0
    %1342 = vmatpush1.msra.mxu0 0.0
    %1343 = vmatprep.subr.mxu0 0.0
    %1344 = vmatpush1.msra.mxu0 0.0
    %1345 = vmatprep.subr.mxu0 0.0
    %1346 = vmatpush1.msra.mxu0 0.0
    %1347 = vmatprep.subr.mxu0 0.0
    %1348 = vmatpush1.msra.mxu0 0.0
    %1349 = vmatprep.subr.mxu0 0.0
    %1350 = vmatpush1.msra.mxu0 0.0
    %1351 = vmatprep.subr.mxu0 0.0
    %1352 = vmatpush1.msra.mxu0 0.0
    %1353 = vmatprep.subr.mxu0 0.0
    %1354 = vmatpush1.msra.mxu0 0.0
    %1355 = vmatprep.subr.mxu0 0.0
    %1356 = vmatpush1.msra.mxu0 0.0
    %1357 = vmatprep.subr.mxu0 0.0
    %1358 = vmatpush1.msra.mxu0 0.0
    %1359 = vmatprep.subr.mxu0 0.0
    %1360 = vmatpush1.msra.mxu0 0.0
    %1361 = vmatprep.subr.mxu0 0.0
    %1362 = vmatpush1.msra.mxu0 0.0
    %1363 = vmatprep.mubr.f32.mxu0 0.0
    %v1364 = vand.u32 %v954, 4294901760
    %v1365 = vsub.f32 %v954, %v1364
    %1366 = vmatmul.mubr.f32.gmra.mrb[0].mxu0 %v1365
    %v1367 = vpop.f32.mrb[0].mxu0
    %v1368 = vadd.f32 %v1238, %v1367
    %v1369 = vpop.f32.mrb[0].mxu0
    %1370 = vmatprep.mubr.f32.mxu0 0.0
    %v1371 = vand.u32 %v957, 4294901760
    %v1372 = vsub.f32 %v957, %v1371
    %1373 = vmatmul.mubr.f32.gmra.mrb[0].mxu0 %v1372
    %v1374 = vpop.f32.mrb[0].mxu0
    %v1375 = vadd.f32 %v1244, %v1374
    %v1376 = vpop.f32.mrb[0].mxu0
    %1377 = vmatprep.mubr.f32.mxu0 0.0
    %v1378 = vand.u32 %v960, 4294901760
    %v1379 = vsub.f32 %v960, %v1378
    %1380 = vmatmul.mubr.f32.gmra.mrb[0].mxu0 %v1379
    %v1381 = vpop.f32.mrb[0].mxu0
    %v1382 = vadd.f32 %v1250, %v1381
    %v1383 = vpop.f32.mrb[0].mxu0
    %1384 = vmatprep.mubr.f32.mxu0 0.0
    %v1385 = vand.u32 %v963, 4294901760
    %v1386 = vsub.f32 %v963, %v1385
    %1387 = vmatmul.mubr.f32.gmra.mrb[0].mxu0 %v1386
    %v1388 = vpop.f32.mrb[0].mxu0
    %v1389 = vadd.f32 %v1256, %v1388
    %v1390 = vpop.f32.mrb[0].mxu0
    %1391 = vmatprep.mubr.f32.mxu0 0.0
    %v1392 = vand.u32 %v966, 4294901760
    %v1393 = vsub.f32 %v966, %v1392
    %1394 = vmatmul.mubr.f32.gmra.mrb[0].mxu0 %v1393
    %v1395 = vpop.f32.mrb[0].mxu0
    %v1396 = vadd.f32 %v1262, %v1395
    %v1397 = vpop.f32.mrb[0].mxu0
    %1398 = vmatprep.mubr.f32.mxu0 0.0
    %v1399 = vand.u32 %v969, 4294901760
    %v1400 = vsub.f32 %v969, %v1399
    %1401 = vmatmul.mubr.f32.gmra.mrb[0].mxu0 %v1400
    %v1402 = vpop.f32.mrb[0].mxu0
    %v1403 = vadd.f32 %v1268, %v1402
    %v1404 = vpop.f32.mrb[0].mxu0
    %1405 = vmatprep.mubr.f32.mxu0 0.0
    %v1406 = vand.u32 %v972, 4294901760
    %v1407 = vsub.f32 %v972, %v1406
    %1408 = vmatmul.mubr.f32.gmra.mrb[0].mxu0 %v1407
    %v1409 = vpop.f32.mrb[0].mxu0
    %v1410 = vadd.f32 %v1274, %v1409
    %v1411 = vpop.f32.mrb[0].mxu0
    %1412 = vmatprep.mubr.f32.mxu0 0.0
    %v1413 = vand.u32 %v975, 4294901760
    %v1414 = vsub.f32 %v975, %v1413
    %1415 = vmatmul.mubr.f32.gmra.mrb[0].mxu0 %v1414
    %v1416 = vpop.f32.mrb[0].mxu0
    %v1417 = vadd.f32 %v1280, %v1416
    %v1418 = vpop.f32.mrb[0].mxu0
    %1419 = vdwg.mxu0
    %1420 = vmatprep.subr.mxu0 0.0
    %v1421 = vand.u32 %v888, 4294901760
    %1422 = vmatpush1.msra.mxu0 %v1421
    %1423 = vmatprep.subr.mxu0 0.0
    %v1424 = vand.u32 %v889, 4294901760
    %1425 = vmatpush1.msra.mxu0 %v1424
    %1426 = vmatprep.subr.mxu0 0.0
    %v1427 = vand.u32 %v890, 4294901760
    %1428 = vmatpush1.msra.mxu0 %v1427
    %1429 = vmatprep.subr.mxu0 0.0
    %v1430 = vand.u32 %v891, 4294901760
    %1431 = vmatpush1.msra.mxu0 %v1430
    %1432 = vmatprep.subr.mxu0 0.0
    %v1433 = vand.u32 %v892, 4294901760
    %1434 = vmatpush1.msra.mxu0 %v1433
    %1435 = vmatprep.subr.mxu0 0.0
    %v1436 = vand.u32 %v893, 4294901760
    %1437 = vmatpush1.msra.mxu0 %v1436
    %1438 = vmatprep.subr.mxu0 0.0
    %v1439 = vand.u32 %v894, 4294901760
    %1440 = vmatpush1.msra.mxu0 %v1439
    %1441 = vmatprep.subr.mxu0 0.0
    %v1442 = vand.u32 %v895, 4294901760
    %1443 = vmatpush1.msra.mxu0 %v1442
    %1444 = vmatprep.subr.mxu0 0.0
    %1445 = vmatpush1.msra.mxu0 0.0
    %1446 = vmatprep.subr.mxu0 0.0
    %1447 = vmatpush1.msra.mxu0 0.0
    %1448 = vmatprep.subr.mxu0 0.0
    %1449 = vmatpush1.msra.mxu0 0.0
    %1450 = vmatprep.subr.mxu0 0.0
    %1451 = vmatpush1.msra.mxu0 0.0
    %1452 = vmatprep.subr.mxu0 0.0
    %1453 = vmatpush1.msra.mxu0 0.0
    %1454 = vmatprep.subr.mxu0 0.0
    %1455 = vmatpush1.msra.mxu0 0.0
    %1456 = vmatprep.subr.mxu0 0.0
    %1457 = vmatpush1.msra.mxu0 0.0
    %1458 = vmatprep.subr.mxu0 0.0
    %1459 = vmatpush1.msra.mxu0 0.0
    %1460 = vmatprep.subr.mxu0 0.0
    %1461 = vmatpush1.msra.mxu0 0.0
    %1462 = vmatprep.subr.mxu0 0.0
    %1463 = vmatpush1.msra.mxu0 0.0
    %1464 = vmatprep.subr.mxu0 0.0
    %1465 = vmatpush1.msra.mxu0 0.0
    %1466 = vmatprep.subr.mxu0 0.0
    %1467 = vmatpush1.msra.mxu0 0.0
    %1468 = vmatprep.subr.mxu0 0.0
    %1469 = vmatpush1.msra.mxu0 0.0
    %1470 = vmatprep.subr.mxu0 0.0
    %1471 = vmatpush1.msra.mxu0 0.0
    %1472 = vmatprep.subr.mxu0 0.0
    %1473 = vmatpush1.msra.mxu0 0.0
    %1474 = vmatprep.subr.mxu0 0.0
    %1475 = vmatpush1.msra.mxu0 0.0
    %1476 = vmatprep.subr.mxu0 0.0
    %1477 = vmatpush1.msra.mxu0 0.0
    %1478 = vmatprep.subr.mxu0 0.0
    %1479 = vmatpush1.msra.mxu0 0.0
    %1480 = vmatprep.subr.mxu0 0.0
    %1481 = vmatpush1.msra.mxu0 0.0
    %1482 = vmatprep.subr.mxu0 0.0
    %1483 = vmatpush1.msra.mxu0 0.0
    %1484 = vmatprep.subr.mxu0 0.0
    %1485 = vmatpush1.msra.mxu0 0.0
    %1486 = vmatprep.subr.mxu0 0.0
    %1487 = vmatpush1.msra.mxu0 0.0
    %1488 = vmatprep.subr.mxu0 0.0
    %1489 = vmatpush1.msra.mxu0 0.0
    %1490 = vmatprep.subr.mxu0 0.0
    %1491 = vmatpush1.msra.mxu0 0.0
    %1492 = vmatprep.mubr.f32.mxu0 0.0
    %v1493 = vand.u32 %v954, 4294901760
    %v1494 = vsub.f32 %v954, %v1493
    %v1495 = vand.u32 %v1494, 4294901760
    %1496 = vmatmul.mubr.f32.gmra.mrb[0].mxu0 %v1495
    %v1497 = vpop.f32.mrb[0].mxu0
    %v1498 = vadd.f32 %v1368, %v1497
    %v1499 = vpop.f32.mrb[0].mxu0
    %1500 = vmatprep.mubr.f32.mxu0 0.0
    %v1501 = vand.u32 %v957, 4294901760
    %v1502 = vsub.f32 %v957, %v1501
    %v1503 = vand.u32 %v1502, 4294901760
    %1504 = vmatmul.mubr.f32.gmra.mrb[0].mxu0 %v1503
    %v1505 = vpop.f32.mrb[0].mxu0
    %v1506 = vadd.f32 %v1375, %v1505
    %v1507 = vpop.f32.mrb[0].mxu0
    %1508 = vmatprep.mubr.f32.mxu0 0.0
    %v1509 = vand.u32 %v960, 4294901760
    %v1510 = vsub.f32 %v960, %v1509
    %v1511 = vand.u32 %v1510, 4294901760
    %1512 = vmatmul.mubr.f32.gmra.mrb[0].mxu0 %v1511
    %v1513 = vpop.f32.mrb[0].mxu0
    %v1514 = vadd.f32 %v1382, %v1513
    %v1515 = vpop.f32.mrb[0].mxu0
    %1516 = vmatprep.mubr.f32.mxu0 0.0
    %v1517 = vand.u32 %v963, 4294901760
    %v1518 = vsub.f32 %v963, %v1517
    %v1519 = vand.u32 %v1518, 4294901760
    %1520 = vmatmul.mubr.f32.gmra.mrb[0].mxu0 %v1519
    %v1521 = vpop.f32.mrb[0].mxu0
    %v1522 = vadd.f32 %v1389, %v1521
    %v1523 = vpop.f32.mrb[0].mxu0
    %1524 = vmatprep.mubr.f32.mxu0 0.0
    %v1525 = vand.u32 %v966, 4294901760
    %v1526 = vsub.f32 %v966, %v1525
    %v1527 = vand.u32 %v1526, 4294901760
    %1528 = vmatmul.mubr.f32.gmra.mrb[0].mxu0 %v1527
    %v1529 = vpop.f32.mrb[0].mxu0
    %v1530 = vadd.f32 %v1396, %v1529
    %v1531 = vpop.f32.mrb[0].mxu0
    %1532 = vmatprep.mubr.f32.mxu0 0.0
    %v1533 = vand.u32 %v969, 4294901760
    %v1534 = vsub.f32 %v969, %v1533
    %v1535 = vand.u32 %v1534, 4294901760
    %1536 = vmatmul.mubr.f32.gmra.mrb[0].mxu0 %v1535
    %v1537 = vpop.f32.mrb[0].mxu0
    %v1538 = vadd.f32 %v1403, %v1537
    %v1539 = vpop.f32.mrb[0].mxu0
    %1540 = vmatprep.mubr.f32.mxu0 0.0
    %v1541 = vand.u32 %v972, 4294901760
    %v1542 = vsub.f32 %v972, %v1541
    %v1543 = vand.u32 %v1542, 4294901760
    %1544 = vmatmul.mubr.f32.gmra.mrb[0].mxu0 %v1543
    %v1545 = vpop.f32.mrb[0].mxu0
    %v1546 = vadd.f32 %v1410, %v1545
    %v1547 = vpop.f32.mrb[0].mxu0
    %1548 = vmatprep.mubr.f32.mxu0 0.0
    %v1549 = vand.u32 %v975, 4294901760
    %v1550 = vsub.f32 %v975, %v1549
    %v1551 = vand.u32 %v1550, 4294901760
    %1552 = vmatmul.mubr.f32.gmra.mrb[0].mxu0 %v1551
    %v1553 = vpop.f32.mrb[0].mxu0
    %v1554 = vadd.f32 %v1417, %v1553
    %v1555 = vpop.f32.mrb[0].mxu0
    %1556 = vdwg.mxu0
    %1557 = vmatprep.subr.mxu0 0.0
    %v1558 = vand.u32 %v888, 4294901760
    %v1559 = vsub.f32 %v888, %v1558
    %v1560 = vand.u32 %v1559, 4294901760
    %1561 = vmatpush1.msra.mxu0 %v1560
    %1562 = vmatprep.subr.mxu0 0.0
    %v1563 = vand.u32 %v889, 4294901760
    %v1564 = vsub.f32 %v889, %v1563
    %v1565 = vand.u32 %v1564, 4294901760
    %1566 = vmatpush1.msra.mxu0 %v1565
    %1567 = vmatprep.subr.mxu0 0.0
    %v1568 = vand.u32 %v890, 4294901760
    %v1569 = vsub.f32 %v890, %v1568
    %v1570 = vand.u32 %v1569, 4294901760
    %1571 = vmatpush1.msra.mxu0 %v1570
    %1572 = vmatprep.subr.mxu0 0.0
    %v1573 = vand.u32 %v891, 4294901760
    %v1574 = vsub.f32 %v891, %v1573
    %v1575 = vand.u32 %v1574, 4294901760
    %1576 = vmatpush1.msra.mxu0 %v1575
    %1577 = vmatprep.subr.mxu0 0.0
    %v1578 = vand.u32 %v892, 4294901760
    %v1579 = vsub.f32 %v892, %v1578
    %v1580 = vand.u32 %v1579, 4294901760
    %1581 = vmatpush1.msra.mxu0 %v1580
    %1582 = vmatprep.subr.mxu0 0.0
    %v1583 = vand.u32 %v893, 4294901760
    %v1584 = vsub.f32 %v893, %v1583
    %v1585 = vand.u32 %v1584, 4294901760
    %1586 = vmatpush1.msra.mxu0 %v1585
    %1587 = vmatprep.subr.mxu0 0.0
    %v1588 = vand.u32 %v894, 4294901760
    %v1589 = vsub.f32 %v894, %v1588
    %v1590 = vand.u32 %v1589, 4294901760
    %1591 = vmatpush1.msra.mxu0 %v1590
    %1592 = vmatprep.subr.mxu0 0.0
    %v1593 = vand.u32 %v895, 4294901760
    %v1594 = vsub.f32 %v895, %v1593
    %v1595 = vand.u32 %v1594, 4294901760
    %1596 = vmatpush1.msra.mxu0 %v1595
    %1597 = vmatprep.subr.mxu0 0.0
    %1598 = vmatpush1.msra.mxu0 0.0
    %1599 = vmatprep.subr.mxu0 0.0
    %1600 = vmatpush1.msra.mxu0 0.0
    %1601 = vmatprep.subr.mxu0 0.0
    %1602 = vmatpush1.msra.mxu0 0.0
    %1603 = vmatprep.subr.mxu0 0.0
    %1604 = vmatpush1.msra.mxu0 0.0
    %1605 = vmatprep.subr.mxu0 0.0
    %1606 = vmatpush1.msra.mxu0 0.0
    %1607 = vmatprep.subr.mxu0 0.0
    %1608 = vmatpush1.msra.mxu0 0.0
    %1609 = vmatprep.subr.mxu0 0.0
    %1610 = vmatpush1.msra.mxu0 0.0
    %1611 = vmatprep.subr.mxu0 0.0
    %1612 = vmatpush1.msra.mxu0 0.0
    %1613 = vmatprep.subr.mxu0 0.0
    %1614 = vmatpush1.msra.mxu0 0.0
    %1615 = vmatprep.subr.mxu0 0.0
    %1616 = vmatpush1.msra.mxu0 0.0
    %1617 = vmatprep.subr.mxu0 0.0
    %1618 = vmatpush1.msra.mxu0 0.0
    %1619 = vmatprep.subr.mxu0 0.0
    %1620 = vmatpush1.msra.mxu0 0.0
    %1621 = vmatprep.subr.mxu0 0.0
    %1622 = vmatpush1.msra.mxu0 0.0
    %1623 = vmatprep.subr.mxu0 0.0
    %1624 = vmatpush1.msra.mxu0 0.0
    %1625 = vmatprep.subr.mxu0 0.0
    %1626 = vmatpush1.msra.mxu0 0.0
    %1627 = vmatprep.subr.mxu0 0.0
    %1628 = vmatpush1.msra.mxu0 0.0
    %1629 = vmatprep.subr.mxu0 0.0
    %1630 = vmatpush1.msra.mxu0 0.0
    %1631 = vmatprep.subr.mxu0 0.0
    %1632 = vmatpush1.msra.mxu0 0.0
    %1633 = vmatprep.subr.mxu0 0.0
    %1634 = vmatpush1.msra.mxu0 0.0
    %1635 = vmatprep.subr.mxu0 0.0
    %1636 = vmatpush1.msra.mxu0 0.0
    %1637 = vmatprep.subr.mxu0 0.0
    %1638 = vmatpush1.msra.mxu0 0.0
    %1639 = vmatprep.subr.mxu0 0.0
    %1640 = vmatpush1.msra.mxu0 0.0
    %1641 = vmatprep.subr.mxu0 0.0
    %1642 = vmatpush1.msra.mxu0 0.0
    %1643 = vmatprep.subr.mxu0 0.0
    %1644 = vmatpush1.msra.mxu0 0.0
    %1645 = vmatprep.mubr.f32.mxu0 0.0
    %v1646 = vand.u32 %v954, 4294901760
    %1647 = vmatmul.mubr.f32.gmra.mrb[0].mxu0 %v1646
    %v1648 = vpop.f32.mrb[0].mxu0
    %v1649 = vadd.f32 %v1498, %v1648
    %v1650 = vpop.f32.mrb[0].mxu0
    %1651 = vmatprep.mubr.f32.mxu0 0.0
    %v1652 = vand.u32 %v957, 4294901760
    %1653 = vmatmul.mubr.f32.gmra.mrb[0].mxu0 %v1652
    %v1654 = vpop.f32.mrb[0].mxu0
    %v1655 = vadd.f32 %v1506, %v1654
    %v1656 = vpop.f32.mrb[0].mxu0
    %1657 = vmatprep.mubr.f32.mxu0 0.0
    %v1658 = vand.u32 %v960, 4294901760
    %1659 = vmatmul.mubr.f32.gmra.mrb[0].mxu0 %v1658
    %v1660 = vpop.f32.mrb[0].mxu0
    %v1661 = vadd.f32 %v1514, %v1660
    %v1662 = vpop.f32.mrb[0].mxu0
    %1663 = vmatprep.mubr.f32.mxu0 0.0
    %v1664 = vand.u32 %v963, 4294901760
    %1665 = vmatmul.mubr.f32.gmra.mrb[0].mxu0 %v1664
    %v1666 = vpop.f32.mrb[0].mxu0
    %v1667 = vadd.f32 %v1522, %v1666
    %v1668 = vpop.f32.mrb[0].mxu0
    %1669 = vmatprep.mubr.f32.mxu0 0.0
    %v1670 = vand.u32 %v966, 4294901760
    %1671 = vmatmul.mubr.f32.gmra.mrb[0].mxu0 %v1670
    %v1672 = vpop.f32.mrb[0].mxu0
    %v1673 = vadd.f32 %v1530, %v1672
    %v1674 = vpop.f32.mrb[0].mxu0
    %1675 = vmatprep.mubr.f32.mxu0 0.0
    %v1676 = vand.u32 %v969, 4294901760
    %1677 = vmatmul.mubr.f32.gmra.mrb[0].mxu0 %v1676
    %v1678 = vpop.f32.mrb[0].mxu0
    %v1679 = vadd.f32 %v1538, %v1678
    %v1680 = vpop.f32.mrb[0].mxu0
    %1681 = vmatprep.mubr.f32.mxu0 0.0
    %v1682 = vand.u32 %v972, 4294901760
    %1683 = vmatmul.mubr.f32.gmra.mrb[0].mxu0 %v1682
    %v1684 = vpop.f32.mrb[0].mxu0
    %v1685 = vadd.f32 %v1546, %v1684
    %v1686 = vpop.f32.mrb[0].mxu0
    %1687 = vmatprep.mubr.f32.mxu0 0.0
    %v1688 = vand.u32 %v975, 4294901760
    %1689 = vmatmul.mubr.f32.gmra.mrb[0].mxu0 %v1688
    %v1690 = vpop.f32.mrb[0].mxu0
    %v1691 = vadd.f32 %v1554, %v1690
    %v1692 = vpop.f32.mrb[0].mxu0
    %1693 = vdwg.mxu0
    %1694 = vmatprep.subr.mxu0 0.0
    %v1695 = vand.u32 %v888, 4294901760
    %1696 = vmatpush1.msra.mxu0 %v1695
    %1697 = vmatprep.subr.mxu0 0.0
    %v1698 = vand.u32 %v889, 4294901760
    %1699 = vmatpush1.msra.mxu0 %v1698
    %1700 = vmatprep.subr.mxu0 0.0
    %v1701 = vand.u32 %v890, 4294901760
    %1702 = vmatpush1.msra.mxu0 %v1701
    %1703 = vmatprep.subr.mxu0 0.0
    %v1704 = vand.u32 %v891, 4294901760
    %1705 = vmatpush1.msra.mxu0 %v1704
    %1706 = vmatprep.subr.mxu0 0.0
    %v1707 = vand.u32 %v892, 4294901760
    %1708 = vmatpush1.msra.mxu0 %v1707
    %1709 = vmatprep.subr.mxu0 0.0
    %v1710 = vand.u32 %v893, 4294901760
    %1711 = vmatpush1.msra.mxu0 %v1710
    %1712 = vmatprep.subr.mxu0 0.0
    %v1713 = vand.u32 %v894, 4294901760
    %1714 = vmatpush1.msra.mxu0 %v1713
    %1715 = vmatprep.subr.mxu0 0.0
    %v1716 = vand.u32 %v895, 4294901760
    %1717 = vmatpush1.msra.mxu0 %v1716
    %1718 = vmatprep.subr.mxu0 0.0
    %1719 = vmatpush1.msra.mxu0 0.0
    %1720 = vmatprep.subr.mxu0 0.0
    %1721 = vmatpush1.msra.mxu0 0.0
    %1722 = vmatprep.subr.mxu0 0.0
    %1723 = vmatpush1.msra.mxu0 0.0
    %1724 = vmatprep.subr.mxu0 0.0
    %1725 = vmatpush1.msra.mxu0 0.0
    %1726 = vmatprep.subr.mxu0 0.0
    %1727 = vmatpush1.msra.mxu0 0.0
    %1728 = vmatprep.subr.mxu0 0.0
    %1729 = vmatpush1.msra.mxu0 0.0
    %1730 = vmatprep.subr.mxu0 0.0
    %1731 = vmatpush1.msra.mxu0 0.0
    %1732 = vmatprep.subr.mxu0 0.0
    %1733 = vmatpush1.msra.mxu0 0.0
    %1734 = vmatprep.subr.mxu0 0.0
    %1735 = vmatpush1.msra.mxu0 0.0
    %1736 = vmatprep.subr.mxu0 0.0
    %1737 = vmatpush1.msra.mxu0 0.0
    %1738 = vmatprep.subr.mxu0 0.0
    %1739 = vmatpush1.msra.mxu0 0.0
    %1740 = vmatprep.subr.mxu0 0.0
    %1741 = vmatpush1.msra.mxu0 0.0
    %1742 = vmatprep.subr.mxu0 0.0
    %1743 = vmatpush1.msra.mxu0 0.0
    %1744 = vmatprep.subr.mxu0 0.0
    %1745 = vmatpush1.msra.mxu0 0.0
    %1746 = vmatprep.subr.mxu0 0.0
    %1747 = vmatpush1.msra.mxu0 0.0
    %1748 = vmatprep.subr.mxu0 0.0
    %1749 = vmatpush1.msra.mxu0 0.0
    %1750 = vmatprep.subr.mxu0 0.0
    %1751 = vmatpush1.msra.mxu0 0.0
    %1752 = vmatprep.subr.mxu0 0.0
    %1753 = vmatpush1.msra.mxu0 0.0
    %1754 = vmatprep.subr.mxu0 0.0
    %1755 = vmatpush1.msra.mxu0 0.0
    %1756 = vmatprep.subr.mxu0 0.0
    %1757 = vmatpush1.msra.mxu0 0.0
    %1758 = vmatprep.subr.mxu0 0.0
    %1759 = vmatpush1.msra.mxu0 0.0
    %1760 = vmatprep.subr.mxu0 0.0
    %1761 = vmatpush1.msra.mxu0 0.0
    %1762 = vmatprep.subr.mxu0 0.0
    %1763 = vmatpush1.msra.mxu0 0.0
    %1764 = vmatprep.subr.mxu0 0.0
    %1765 = vmatpush1.msra.mxu0 0.0
    %1766 = vmatprep.mubr.f32.mxu0 0.0
    %v1767 = vand.u32 %v954, 4294901760
    %1768 = vmatmul.mubr.f32.gmra.mrb[0].mxu0 %v1767
    %v1769 = vpop.f32.mrb[0].mxu0
    %v1770 = vadd.f32 %v1649, %v1769
    %v1771 = vpop.f32.mrb[0].mxu0
    %1772 = vmatprep.mubr.f32.mxu0 0.0
    %v1773 = vand.u32 %v957, 4294901760
    %1774 = vmatmul.mubr.f32.gmra.mrb[0].mxu0 %v1773
    %v1775 = vpop.f32.mrb[0].mxu0
    %v1776 = vadd.f32 %v1655, %v1775
    %v1777 = vpop.f32.mrb[0].mxu0
    %1778 = vmatprep.mubr.f32.mxu0 0.0
    %v1779 = vand.u32 %v960, 4294901760
    %1780 = vmatmul.mubr.f32.gmra.mrb[0].mxu0 %v1779
    %v1781 = vpop.f32.mrb[0].mxu0
    %v1782 = vadd.f32 %v1661, %v1781
    %v1783 = vpop.f32.mrb[0].mxu0
    %1784 = vmatprep.mubr.f32.mxu0 0.0
    %v1785 = vand.u32 %v963, 4294901760
    %1786 = vmatmul.mubr.f32.gmra.mrb[0].mxu0 %v1785
    %v1787 = vpop.f32.mrb[0].mxu0
    %v1788 = vadd.f32 %v1667, %v1787
    %v1789 = vpop.f32.mrb[0].mxu0
    %1790 = vmatprep.mubr.f32.mxu0 0.0
    %v1791 = vand.u32 %v966, 4294901760
    %1792 = vmatmul.mubr.f32.gmra.mrb[0].mxu0 %v1791
    %v1793 = vpop.f32.mrb[0].mxu0
    %v1794 = vadd.f32 %v1673, %v1793
    %v1795 = vpop.f32.mrb[0].mxu0
    %1796 = vmatprep.mubr.f32.mxu0 0.0
    %v1797 = vand.u32 %v969, 4294901760
    %1798 = vmatmul.mubr.f32.gmra.mrb[0].mxu0 %v1797
    %v1799 = vpop.f32.mrb[0].mxu0
    %v1800 = vadd.f32 %v1679, %v1799
    %v1801 = vpop.f32.mrb[0].mxu0
    %1802 = vmatprep.mubr.f32.mxu0 0.0
    %v1803 = vand.u32 %v972, 4294901760
    %1804 = vmatmul.mubr.f32.gmra.mrb[0].mxu0 %v1803
    %v1805 = vpop.f32.mrb[0].mxu0
    %v1806 = vadd.f32 %v1685, %v1805
    %v1807 = vpop.f32.mrb[0].mxu0
    %1808 = vmatprep.mubr.f32.mxu0 0.0
    %v1809 = vand.u32 %v975, 4294901760
    %1810 = vmatmul.mubr.f32.gmra.mrb[0].mxu0 %v1809
    %v1811 = vpop.f32.mrb[0].mxu0
    %v1812 = vadd.f32 %v1691, %v1811
    %v1813 = vpop.f32.mrb[0].mxu0
    %1814 = vdwg.mxu0
    %v1815 = vmax.f32 %v1770, 0.0
    %v1816 = vmax.f32 %v1776, 0.0
    %v1817 = vmax.f32 %v1782, 0.0
    %v1818 = vmax.f32 %v1788, 0.0
    %v1819 = vmax.f32 %v1794, 0.0
    %v1820 = vmax.f32 %v1800, 0.0
    %v1821 = vmax.f32 %v1806, 0.0
    %v1822 = vmax.f32 %v1812, 0.0
    %v1823 = vld [vmem:[%s5] sm:$0xff]
    %v1824 = vld [vmem:[%s5 + $0x8] sm:$0xff]
    %v1825 = vld [vmem:[%s6] sm:$0xff]
    %v1826 = vld [vmem:[%s6 + $0x8] sm:$0xff]
    %1828 = vset.pattern.permute.xlu0 0
    %1829 = vperm.xlu0 %1828, %v1825
    %v1830 = vpop.permute.xlu0 %1829
    %1833 = vset.pattern.permute.xlu0 0
    %1834 = vperm.xlu0 %1833, %v1826
    %v1835 = vpop.permute.xlu0 %1834
    %v1838 = vsel %vm952, %v1823, 0
    %v1841 = vsel %vm952, %v1824, 0
    %1843 = vmatprep.subr.mxu0 0.0
    %v1844 = vand.u32 %v1815, 4294901760
    %1845 = vmatpush1.msra.mxu0 %v1844
    %1846 = vmatprep.subr.mxu0 0.0
    %v1847 = vand.u32 %v1816, 4294901760
    %1848 = vmatpush1.msra.mxu0 %v1847
    %1849 = vmatprep.subr.mxu0 0.0
    %v1850 = vand.u32 %v1817, 4294901760
    %1851 = vmatpush1.msra.mxu0 %v1850
    %1852 = vmatprep.subr.mxu0 0.0
    %v1853 = vand.u32 %v1818, 4294901760
    %1854 = vmatpush1.msra.mxu0 %v1853
    %1855 = vmatprep.subr.mxu0 0.0
    %v1856 = vand.u32 %v1819, 4294901760
    %1857 = vmatpush1.msra.mxu0 %v1856
    %1858 = vmatprep.subr.mxu0 0.0
    %v1859 = vand.u32 %v1820, 4294901760
    %1860 = vmatpush1.msra.mxu0 %v1859
    %1861 = vmatprep.subr.mxu0 0.0
    %v1862 = vand.u32 %v1821, 4294901760
    %1863 = vmatpush1.msra.mxu0 %v1862
    %1864 = vmatprep.subr.mxu0 0.0
    %v1865 = vand.u32 %v1822, 4294901760
    %1866 = vmatpush1.msra.mxu0 %v1865
    %1867 = vmatprep.subr.mxu0 0.0
    %1868 = vmatpush1.msra.mxu0 0.0
    %1869 = vmatprep.subr.mxu0 0.0
    %1870 = vmatpush1.msra.mxu0 0.0
    %1871 = vmatprep.subr.mxu0 0.0
    %1872 = vmatpush1.msra.mxu0 0.0
    %1873 = vmatprep.subr.mxu0 0.0
    %1874 = vmatpush1.msra.mxu0 0.0
    %1875 = vmatprep.subr.mxu0 0.0
    %1876 = vmatpush1.msra.mxu0 0.0
    %1877 = vmatprep.subr.mxu0 0.0
    %1878 = vmatpush1.msra.mxu0 0.0
    %1879 = vmatprep.subr.mxu0 0.0
    %1880 = vmatpush1.msra.mxu0 0.0
    %1881 = vmatprep.subr.mxu0 0.0
    %1882 = vmatpush1.msra.mxu0 0.0
    %1883 = vmatprep.subr.mxu0 0.0
    %1884 = vmatpush1.msra.mxu0 0.0
    %1885 = vmatprep.subr.mxu0 0.0
    %1886 = vmatpush1.msra.mxu0 0.0
    %1887 = vmatprep.subr.mxu0 0.0
    %1888 = vmatpush1.msra.mxu0 0.0
    %1889 = vmatprep.subr.mxu0 0.0
    %1890 = vmatpush1.msra.mxu0 0.0
    %1891 = vmatprep.subr.mxu0 0.0
    %1892 = vmatpush1.msra.mxu0 0.0
    %1893 = vmatprep.subr.mxu0 0.0
    %1894 = vmatpush1.msra.mxu0 0.0
    %1895 = vmatprep.subr.mxu0 0.0
    %1896 = vmatpush1.msra.mxu0 0.0
    %1897 = vmatprep.subr.mxu0 0.0
    %1898 = vmatpush1.msra.mxu0 0.0
    %1899 = vmatprep.subr.mxu0 0.0
    %1900 = vmatpush1.msra.mxu0 0.0
    %1901 = vmatprep.subr.mxu0 0.0
    %1902 = vmatpush1.msra.mxu0 0.0
    %1903 = vmatprep.subr.mxu0 0.0
    %1904 = vmatpush1.msra.mxu0 0.0
    %1905 = vmatprep.subr.mxu0 0.0
    %1906 = vmatpush1.msra.mxu0 0.0
    %1907 = vmatprep.subr.mxu0 0.0
    %1908 = vmatpush1.msra.mxu0 0.0
    %1909 = vmatprep.subr.mxu0 0.0
    %1910 = vmatpush1.msra.mxu0 0.0
    %1911 = vmatprep.subr.mxu0 0.0
    %1912 = vmatpush1.msra.mxu0 0.0
    %1913 = vmatprep.subr.mxu0 0.0
    %1914 = vmatpush1.msra.mxu0 0.0
    %1915 = vmatprep.mubr.f32.mxu0 0.0
    %v1916 = vand.u32 %v1838, 4294901760
    %v1917 = vsub.f32 %v1838, %v1916
    %v1918 = vand.u32 %v1917, 4294901760
    %v1919 = vsub.f32 %v1917, %v1918
    %v1920 = vand.u32 %v1919, 4294901760
    %1921 = vmatmul.mubr.f32.gmra.mrb[0].mxu0 %v1920
    %v1922 = vpop.f32.mrb[0].mxu0
    %v1923 = vadd.f32 %v1830, %v1922
    %v1924 = vpop.f32.mrb[0].mxu0
    %1925 = vmatprep.mubr.f32.mxu0 0.0
    %v1926 = vand.u32 %v1841, 4294901760
    %v1927 = vsub.f32 %v1841, %v1926
    %v1928 = vand.u32 %v1927, 4294901760
    %v1929 = vsub.f32 %v1927, %v1928
    %v1930 = vand.u32 %v1929, 4294901760
    %1931 = vmatmul.mubr.f32.gmra.mrb[0].mxu0 %v1930
    %v1932 = vpop.f32.mrb[0].mxu0
    %v1933 = vadd.f32 %v1835, %v1932
    %v1934 = vpop.f32.mrb[0].mxu0
    %1935 = vdwg.mxu0
    %1936 = vmatprep.subr.mxu0 0.0
    %v1937 = vand.u32 %v1815, 4294901760
    %v1938 = vsub.f32 %v1815, %v1937
    %v1939 = vand.u32 %v1938, 4294901760
    %v1940 = vsub.f32 %v1938, %v1939
    %v1941 = vand.u32 %v1940, 4294901760
    %1942 = vmatpush1.msra.mxu0 %v1941
    %1943 = vmatprep.subr.mxu0 0.0
    %v1944 = vand.u32 %v1816, 4294901760
    %v1945 = vsub.f32 %v1816, %v1944
    %v1946 = vand.u32 %v1945, 4294901760
    %v1947 = vsub.f32 %v1945, %v1946
    %v1948 = vand.u32 %v1947, 4294901760
    %1949 = vmatpush1.msra.mxu0 %v1948
    %1950 = vmatprep.subr.mxu0 0.0
    %v1951 = vand.u32 %v1817, 4294901760
    %v1952 = vsub.f32 %v1817, %v1951
    %v1953 = vand.u32 %v1952, 4294901760
    %v1954 = vsub.f32 %v1952, %v1953
    %v1955 = vand.u32 %v1954, 4294901760
    %1956 = vmatpush1.msra.mxu0 %v1955
    %1957 = vmatprep.subr.mxu0 0.0
    %v1958 = vand.u32 %v1818, 4294901760
    %v1959 = vsub.f32 %v1818, %v1958
    %v1960 = vand.u32 %v1959, 4294901760
    %v1961 = vsub.f32 %v1959, %v1960
    %v1962 = vand.u32 %v1961, 4294901760
    %1963 = vmatpush1.msra.mxu0 %v1962
    %1964 = vmatprep.subr.mxu0 0.0
    %v1965 = vand.u32 %v1819, 4294901760
    %v1966 = vsub.f32 %v1819, %v1965
    %v1967 = vand.u32 %v1966, 4294901760
    %v1968 = vsub.f32 %v1966, %v1967
    %v1969 = vand.u32 %v1968, 4294901760
    %1970 = vmatpush1.msra.mxu0 %v1969
    %1971 = vmatprep.subr.mxu0 0.0
    %v1972 = vand.u32 %v1820, 4294901760
    %v1973 = vsub.f32 %v1820, %v1972
    %v1974 = vand.u32 %v1973, 4294901760
    %v1975 = vsub.f32 %v1973, %v1974
    %v1976 = vand.u32 %v1975, 4294901760
    %1977 = vmatpush1.msra.mxu0 %v1976
    %1978 = vmatprep.subr.mxu0 0.0
    %v1979 = vand.u32 %v1821, 4294901760
    %v1980 = vsub.f32 %v1821, %v1979
    %v1981 = vand.u32 %v1980, 4294901760
    %v1982 = vsub.f32 %v1980, %v1981
    %v1983 = vand.u32 %v1982, 4294901760
    %1984 = vmatpush1.msra.mxu0 %v1983
    %1985 = vmatprep.subr.mxu0 0.0
    %v1986 = vand.u32 %v1822, 4294901760
    %v1987 = vsub.f32 %v1822, %v1986
    %v1988 = vand.u32 %v1987, 4294901760
    %v1989 = vsub.f32 %v1987, %v1988
    %v1990 = vand.u32 %v1989, 4294901760
    %1991 = vmatpush1.msra.mxu0 %v1990
    %1992 = vmatprep.subr.mxu0 0.0
    %1993 = vmatpush1.msra.mxu0 0.0
    %1994 = vmatprep.subr.mxu0 0.0
    %1995 = vmatpush1.msra.mxu0 0.0
    %1996 = vmatprep.subr.mxu0 0.0
    %1997 = vmatpush1.msra.mxu0 0.0
    %1998 = vmatprep.subr.mxu0 0.0
    %1999 = vmatpush1.msra.mxu0 0.0
    %2000 = vmatprep.subr.mxu0 0.0
    %2001 = vmatpush1.msra.mxu0 0.0
    %2002 = vmatprep.subr.mxu0 0.0
    %2003 = vmatpush1.msra.mxu0 0.0
    %2004 = vmatprep.subr.mxu0 0.0
    %2005 = vmatpush1.msra.mxu0 0.0
    %2006 = vmatprep.subr.mxu0 0.0
    %2007 = vmatpush1.msra.mxu0 0.0
    %2008 = vmatprep.subr.mxu0 0.0
    %2009 = vmatpush1.msra.mxu0 0.0
    %2010 = vmatprep.subr.mxu0 0.0
    %2011 = vmatpush1.msra.mxu0 0.0
    %2012 = vmatprep.subr.mxu0 0.0
    %2013 = vmatpush1.msra.mxu0 0.0
    %2014 = vmatprep.subr.mxu0 0.0
    %2015 = vmatpush1.msra.mxu0 0.0
    %2016 = vmatprep.subr.mxu0 0.0
    %2017 = vmatpush1.msra.mxu0 0.0
    %2018 = vmatprep.subr.mxu0 0.0
    %2019 = vmatpush1.msra.mxu0 0.0
    %2020 = vmatprep.subr.mxu0 0.0
    %2021 = vmatpush1.msra.mxu0 0.0
    %2022 = vmatprep.subr.mxu0 0.0
    %2023 = vmatpush1.msra.mxu0 0.0
    %2024 = vmatprep.subr.mxu0 0.0
    %2025 = vmatpush1.msra.mxu0 0.0
    %2026 = vmatprep.subr.mxu0 0.0
    %2027 = vmatpush1.msra.mxu0 0.0
    %2028 = vmatprep.subr.mxu0 0.0
    %2029 = vmatpush1.msra.mxu0 0.0
    %2030 = vmatprep.subr.mxu0 0.0
    %2031 = vmatpush1.msra.mxu0 0.0
    %2032 = vmatprep.subr.mxu0 0.0
    %2033 = vmatpush1.msra.mxu0 0.0
    %2034 = vmatprep.subr.mxu0 0.0
    %2035 = vmatpush1.msra.mxu0 0.0
    %2036 = vmatprep.subr.mxu0 0.0
    %2037 = vmatpush1.msra.mxu0 0.0
    %2038 = vmatprep.subr.mxu0 0.0
    %2039 = vmatpush1.msra.mxu0 0.0
    %2040 = vmatprep.mubr.f32.mxu0 0.0
    %v2041 = vand.u32 %v1838, 4294901760
    %2042 = vmatmul.mubr.f32.gmra.mrb[0].mxu0 %v2041
    %v2043 = vpop.f32.mrb[0].mxu0
    %v2044 = vadd.f32 %v1923, %v2043
    %v2045 = vpop.f32.mrb[0].mxu0
    %2046 = vmatprep.mubr.f32.mxu0 0.0
    %v2047 = vand.u32 %v1841, 4294901760
    %2048 = vmatmul.mubr.f32.gmra.mrb[0].mxu0 %v2047
    %v2049 = vpop.f32.mrb[0].mxu0
    %v2050 = vadd.f32 %v1933, %v2049
    %v2051 = vpop.f32.mrb[0].mxu0
    %2052 = vdwg.mxu0
    %2053 = vmatprep.subr.mxu0 0.0
    %v2054 = vand.u32 %v1815, 4294901760
    %v2055 = vsub.f32 %v1815, %v2054
    %2056 = vmatpush1.msra.mxu0 %v2055
    %2057 = vmatprep.subr.mxu0 0.0
    %v2058 = vand.u32 %v1816, 4294901760
    %v2059 = vsub.f32 %v1816, %v2058
    %2060 = vmatpush1.msra.mxu0 %v2059
    %2061 = vmatprep.subr.mxu0 0.0
    %v2062 = vand.u32 %v1817, 4294901760
    %v2063 = vsub.f32 %v1817, %v2062
    %2064 = vmatpush1.msra.mxu0 %v2063
    %2065 = vmatprep.subr.mxu0 0.0
    %v2066 = vand.u32 %v1818, 4294901760
    %v2067 = vsub.f32 %v1818, %v2066
    %2068 = vmatpush1.msra.mxu0 %v2067
    %2069 = vmatprep.subr.mxu0 0.0
    %v2070 = vand.u32 %v1819, 4294901760
    %v2071 = vsub.f32 %v1819, %v2070
    %2072 = vmatpush1.msra.mxu0 %v2071
    %2073 = vmatprep.subr.mxu0 0.0
    %v2074 = vand.u32 %v1820, 4294901760
    %v2075 = vsub.f32 %v1820, %v2074
    %2076 = vmatpush1.msra.mxu0 %v2075
    %2077 = vmatprep.subr.mxu0 0.0
    %v2078 = vand.u32 %v1821, 4294901760
    %v2079 = vsub.f32 %v1821, %v2078
    %2080 = vmatpush1.msra.mxu0 %v2079
    %2081 = vmatprep.subr.mxu0 0.0
    %v2082 = vand.u32 %v1822, 4294901760
    %v2083 = vsub.f32 %v1822, %v2082
    %2084 = vmatpush1.msra.mxu0 %v2083
    %2085 = vmatprep.subr.mxu0 0.0
    %2086 = vmatpush1.msra.mxu0 0.0
    %2087 = vmatprep.subr.mxu0 0.0
    %2088 = vmatpush1.msra.mxu0 0.0
    %2089 = vmatprep.subr.mxu0 0.0
    %2090 = vmatpush1.msra.mxu0 0.0
    %2091 = vmatprep.subr.mxu0 0.0
    %2092 = vmatpush1.msra.mxu0 0.0
    %2093 = vmatprep.subr.mxu0 0.0
    %2094 = vmatpush1.msra.mxu0 0.0
    %2095 = vmatprep.subr.mxu0 0.0
    %2096 = vmatpush1.msra.mxu0 0.0
    %2097 = vmatprep.subr.mxu0 0.0
    %2098 = vmatpush1.msra.mxu0 0.0
    %2099 = vmatprep.subr.mxu0 0.0
    %2100 = vmatpush1.msra.mxu0 0.0
    %2101 = vmatprep.subr.mxu0 0.0
    %2102 = vmatpush1.msra.mxu0 0.0
    %2103 = vmatprep.subr.mxu0 0.0
    %2104 = vmatpush1.msra.mxu0 0.0
    %2105 = vmatprep.subr.mxu0 0.0
    %2106 = vmatpush1.msra.mxu0 0.0
    %2107 = vmatprep.subr.mxu0 0.0
    %2108 = vmatpush1.msra.mxu0 0.0
    %2109 = vmatprep.subr.mxu0 0.0
    %2110 = vmatpush1.msra.mxu0 0.0
    %2111 = vmatprep.subr.mxu0 0.0
    %2112 = vmatpush1.msra.mxu0 0.0
    %2113 = vmatprep.subr.mxu0 0.0
    %2114 = vmatpush1.msra.mxu0 0.0
    %2115 = vmatprep.subr.mxu0 0.0
    %2116 = vmatpush1.msra.mxu0 0.0
    %2117 = vmatprep.subr.mxu0 0.0
    %2118 = vmatpush1.msra.mxu0 0.0
    %2119 = vmatprep.subr.mxu0 0.0
    %2120 = vmatpush1.msra.mxu0 0.0
    %2121 = vmatprep.subr.mxu0 0.0
    %2122 = vmatpush1.msra.mxu0 0.0
    %2123 = vmatprep.subr.mxu0 0.0
    %2124 = vmatpush1.msra.mxu0 0.0
    %2125 = vmatprep.subr.mxu0 0.0
    %2126 = vmatpush1.msra.mxu0 0.0
    %2127 = vmatprep.subr.mxu0 0.0
    %2128 = vmatpush1.msra.mxu0 0.0
    %2129 = vmatprep.subr.mxu0 0.0
    %2130 = vmatpush1.msra.mxu0 0.0
    %2131 = vmatprep.subr.mxu0 0.0
    %2132 = vmatpush1.msra.mxu0 0.0
    %2133 = vmatprep.mubr.f32.mxu0 0.0
    %v2134 = vand.u32 %v1838, 4294901760
    %v2135 = vsub.f32 %v1838, %v2134
    %2136 = vmatmul.mubr.f32.gmra.mrb[0].mxu0 %v2135
    %v2137 = vpop.f32.mrb[0].mxu0
    %v2138 = vadd.f32 %v2044, %v2137
    %v2139 = vpop.f32.mrb[0].mxu0
    %2140 = vmatprep.mubr.f32.mxu0 0.0
    %v2141 = vand.u32 %v1841, 4294901760
    %v2142 = vsub.f32 %v1841, %v2141
    %2143 = vmatmul.mubr.f32.gmra.mrb[0].mxu0 %v2142
    %v2144 = vpop.f32.mrb[0].mxu0
    %v2145 = vadd.f32 %v2050, %v2144
    %v2146 = vpop.f32.mrb[0].mxu0
    %2147 = vdwg.mxu0
    %2148 = vmatprep.subr.mxu0 0.0
    %v2149 = vand.u32 %v1815, 4294901760
    %2150 = vmatpush1.msra.mxu0 %v2149
    %2151 = vmatprep.subr.mxu0 0.0
    %v2152 = vand.u32 %v1816, 4294901760
    %2153 = vmatpush1.msra.mxu0 %v2152
    %2154 = vmatprep.subr.mxu0 0.0
    %v2155 = vand.u32 %v1817, 4294901760
    %2156 = vmatpush1.msra.mxu0 %v2155
    %2157 = vmatprep.subr.mxu0 0.0
    %v2158 = vand.u32 %v1818, 4294901760
    %2159 = vmatpush1.msra.mxu0 %v2158
    %2160 = vmatprep.subr.mxu0 0.0
    %v2161 = vand.u32 %v1819, 4294901760
    %2162 = vmatpush1.msra.mxu0 %v2161
    %2163 = vmatprep.subr.mxu0 0.0
    %v2164 = vand.u32 %v1820, 4294901760
    %2165 = vmatpush1.msra.mxu0 %v2164
    %2166 = vmatprep.subr.mxu0 0.0
    %v2167 = vand.u32 %v1821, 4294901760
    %2168 = vmatpush1.msra.mxu0 %v2167
    %2169 = vmatprep.subr.mxu0 0.0
    %v2170 = vand.u32 %v1822, 4294901760
    %2171 = vmatpush1.msra.mxu0 %v2170
    %2172 = vmatprep.subr.mxu0 0.0
    %2173 = vmatpush1.msra.mxu0 0.0
    %2174 = vmatprep.subr.mxu0 0.0
    %2175 = vmatpush1.msra.mxu0 0.0
    %2176 = vmatprep.subr.mxu0 0.0
    %2177 = vmatpush1.msra.mxu0 0.0
    %2178 = vmatprep.subr.mxu0 0.0
    %2179 = vmatpush1.msra.mxu0 0.0
    %2180 = vmatprep.subr.mxu0 0.0
    %2181 = vmatpush1.msra.mxu0 0.0
    %2182 = vmatprep.subr.mxu0 0.0
    %2183 = vmatpush1.msra.mxu0 0.0
    %2184 = vmatprep.subr.mxu0 0.0
    %2185 = vmatpush1.msra.mxu0 0.0
    %2186 = vmatprep.subr.mxu0 0.0
    %2187 = vmatpush1.msra.mxu0 0.0
    %2188 = vmatprep.subr.mxu0 0.0
    %2189 = vmatpush1.msra.mxu0 0.0
    %2190 = vmatprep.subr.mxu0 0.0
    %2191 = vmatpush1.msra.mxu0 0.0
    %2192 = vmatprep.subr.mxu0 0.0
    %2193 = vmatpush1.msra.mxu0 0.0
    %2194 = vmatprep.subr.mxu0 0.0
    %2195 = vmatpush1.msra.mxu0 0.0
    %2196 = vmatprep.subr.mxu0 0.0
    %2197 = vmatpush1.msra.mxu0 0.0
    %2198 = vmatprep.subr.mxu0 0.0
    %2199 = vmatpush1.msra.mxu0 0.0
    %2200 = vmatprep.subr.mxu0 0.0
    %2201 = vmatpush1.msra.mxu0 0.0
    %2202 = vmatprep.subr.mxu0 0.0
    %2203 = vmatpush1.msra.mxu0 0.0
    %2204 = vmatprep.subr.mxu0 0.0
    %2205 = vmatpush1.msra.mxu0 0.0
    %2206 = vmatprep.subr.mxu0 0.0
    %2207 = vmatpush1.msra.mxu0 0.0
    %2208 = vmatprep.subr.mxu0 0.0
    %2209 = vmatpush1.msra.mxu0 0.0
    %2210 = vmatprep.subr.mxu0 0.0
    %2211 = vmatpush1.msra.mxu0 0.0
    %2212 = vmatprep.subr.mxu0 0.0
    %2213 = vmatpush1.msra.mxu0 0.0
    %2214 = vmatprep.subr.mxu0 0.0
    %2215 = vmatpush1.msra.mxu0 0.0
    %2216 = vmatprep.subr.mxu0 0.0
    %2217 = vmatpush1.msra.mxu0 0.0
    %2218 = vmatprep.subr.mxu0 0.0
    %2219 = vmatpush1.msra.mxu0 0.0
    %2220 = vmatprep.mubr.f32.mxu0 0.0
    %v2221 = vand.u32 %v1838, 4294901760
    %v2222 = vsub.f32 %v1838, %v2221
    %v2223 = vand.u32 %v2222, 4294901760
    %2224 = vmatmul.mubr.f32.gmra.mrb[0].mxu0 %v2223
    %v2225 = vpop.f32.mrb[0].mxu0
    %v2226 = vadd.f32 %v2138, %v2225
    %v2227 = vpop.f32.mrb[0].mxu0
    %2228 = vmatprep.mubr.f32.mxu0 0.0
    %v2229 = vand.u32 %v1841, 4294901760
    %v2230 = vsub.f32 %v1841, %v2229
    %v2231 = vand.u32 %v2230, 4294901760
    %2232 = vmatmul.mubr.f32.gmra.mrb[0].mxu0 %v2231
    %v2233 = vpop.f32.mrb[0].mxu0
    %v2234 = vadd.f32 %v2145, %v2233
    %v2235 = vpop.f32.mrb[0].mxu0
    %2236 = vdwg.mxu0
    %2237 = vmatprep.subr.mxu0 0.0
    %v2238 = vand.u32 %v1815, 4294901760
    %v2239 = vsub.f32 %v1815, %v2238
    %v2240 = vand.u32 %v2239, 4294901760
    %2241 = vmatpush1.msra.mxu0 %v2240
    %2242 = vmatprep.subr.mxu0 0.0
    %v2243 = vand.u32 %v1816, 4294901760
    %v2244 = vsub.f32 %v1816, %v2243
    %v2245 = vand.u32 %v2244, 4294901760
    %2246 = vmatpush1.msra.mxu0 %v2245
    %2247 = vmatprep.subr.mxu0 0.0
    %v2248 = vand.u32 %v1817, 4294901760
    %v2249 = vsub.f32 %v1817, %v2248
    %v2250 = vand.u32 %v2249, 4294901760
    %2251 = vmatpush1.msra.mxu0 %v2250
    %2252 = vmatprep.subr.mxu0 0.0
    %v2253 = vand.u32 %v1818, 4294901760
    %v2254 = vsub.f32 %v1818, %v2253
    %v2255 = vand.u32 %v2254, 4294901760
    %2256 = vmatpush1.msra.mxu0 %v2255
    %2257 = vmatprep.subr.mxu0 0.0
    %v2258 = vand.u32 %v1819, 4294901760
    %v2259 = vsub.f32 %v1819, %v2258
    %v2260 = vand.u32 %v2259, 4294901760
    %2261 = vmatpush1.msra.mxu0 %v2260
    %2262 = vmatprep.subr.mxu0 0.0
    %v2263 = vand.u32 %v1820, 4294901760
    %v2264 = vsub.f32 %v1820, %v2263
    %v2265 = vand.u32 %v2264, 4294901760
    %2266 = vmatpush1.msra.mxu0 %v2265
    %2267 = vmatprep.subr.mxu0 0.0
    %v2268 = vand.u32 %v1821, 4294901760
    %v2269 = vsub.f32 %v1821, %v2268
    %v2270 = vand.u32 %v2269, 4294901760
    %2271 = vmatpush1.msra.mxu0 %v2270
    %2272 = vmatprep.subr.mxu0 0.0
    %v2273 = vand.u32 %v1822, 4294901760
    %v2274 = vsub.f32 %v1822, %v2273
    %v2275 = vand.u32 %v2274, 4294901760
    %2276 = vmatpush1.msra.mxu0 %v2275
    %2277 = vmatprep.subr.mxu0 0.0
    %2278 = vmatpush1.msra.mxu0 0.0
    %2279 = vmatprep.subr.mxu0 0.0
    %2280 = vmatpush1.msra.mxu0 0.0
    %2281 = vmatprep.subr.mxu0 0.0
    %2282 = vmatpush1.msra.mxu0 0.0
    %2283 = vmatprep.subr.mxu0 0.0
    %2284 = vmatpush1.msra.mxu0 0.0
    %2285 = vmatprep.subr.mxu0 0.0
    %2286 = vmatpush1.msra.mxu0 0.0
    %2287 = vmatprep.subr.mxu0 0.0
    %2288 = vmatpush1.msra.mxu0 0.0
    %2289 = vmatprep.subr.mxu0 0.0
    %2290 = vmatpush1.msra.mxu0 0.0
    %2291 = vmatprep.subr.mxu0 0.0
    %2292 = vmatpush1.msra.mxu0 0.0
    %2293 = vmatprep.subr.mxu0 0.0
    %2294 = vmatpush1.msra.mxu0 0.0
    %2295 = vmatprep.subr.mxu0 0.0
    %2296 = vmatpush1.msra.mxu0 0.0
    %2297 = vmatprep.subr.mxu0 0.0
    %2298 = vmatpush1.msra.mxu0 0.0
    %2299 = vmatprep.subr.mxu0 0.0
    %2300 = vmatpush1.msra.mxu0 0.0
    %2301 = vmatprep.subr.mxu0 0.0
    %2302 = vmatpush1.msra.mxu0 0.0
    %2303 = vmatprep.subr.mxu0 0.0
    %2304 = vmatpush1.msra.mxu0 0.0
    %2305 = vmatprep.subr.mxu0 0.0
    %2306 = vmatpush1.msra.mxu0 0.0
    %2307 = vmatprep.subr.mxu0 0.0
    %2308 = vmatpush1.msra.mxu0 0.0
    %2309 = vmatprep.subr.mxu0 0.0
    %2310 = vmatpush1.msra.mxu0 0.0
    %2311 = vmatprep.subr.mxu0 0.0
    %2312 = vmatpush1.msra.mxu0 0.0
    %2313 = vmatprep.subr.mxu0 0.0
    %2314 = vmatpush1.msra.mxu0 0.0
    %2315 = vmatprep.subr.mxu0 0.0
    %2316 = vmatpush1.msra.mxu0 0.0
    %2317 = vmatprep.subr.mxu0 0.0
    %2318 = vmatpush1.msra.mxu0 0.0
    %2319 = vmatprep.subr.mxu0 0.0
    %2320 = vmatpush1.msra.mxu0 0.0
    %2321 = vmatprep.subr.mxu0 0.0
    %2322 = vmatpush1.msra.mxu0 0.0
    %2323 = vmatprep.subr.mxu0 0.0
    %2324 = vmatpush1.msra.mxu0 0.0
    %2325 = vmatprep.mubr.f32.mxu0 0.0
    %v2326 = vand.u32 %v1838, 4294901760
    %2327 = vmatmul.mubr.f32.gmra.mrb[0].mxu0 %v2326
    %v2328 = vpop.f32.mrb[0].mxu0
    %v2329 = vadd.f32 %v2226, %v2328
    %v2330 = vpop.f32.mrb[0].mxu0
    %2331 = vmatprep.mubr.f32.mxu0 0.0
    %v2332 = vand.u32 %v1841, 4294901760
    %2333 = vmatmul.mubr.f32.gmra.mrb[0].mxu0 %v2332
    %v2334 = vpop.f32.mrb[0].mxu0
    %v2335 = vadd.f32 %v2234, %v2334
    %v2336 = vpop.f32.mrb[0].mxu0
    %2337 = vdwg.mxu0
    %2338 = vmatprep.subr.mxu0 0.0
    %v2339 = vand.u32 %v1815, 4294901760
    %2340 = vmatpush1.msra.mxu0 %v2339
    %2341 = vmatprep.subr.mxu0 0.0
    %v2342 = vand.u32 %v1816, 4294901760
    %2343 = vmatpush1.msra.mxu0 %v2342
    %2344 = vmatprep.subr.mxu0 0.0
    %v2345 = vand.u32 %v1817, 4294901760
    %2346 = vmatpush1.msra.mxu0 %v2345
    %2347 = vmatprep.subr.mxu0 0.0
    %v2348 = vand.u32 %v1818, 4294901760
    %2349 = vmatpush1.msra.mxu0 %v2348
    %2350 = vmatprep.subr.mxu0 0.0
    %v2351 = vand.u32 %v1819, 4294901760
    %2352 = vmatpush1.msra.mxu0 %v2351
    %2353 = vmatprep.subr.mxu0 0.0
    %v2354 = vand.u32 %v1820, 4294901760
    %2355 = vmatpush1.msra.mxu0 %v2354
    %2356 = vmatprep.subr.mxu0 0.0
    %v2357 = vand.u32 %v1821, 4294901760
    %2358 = vmatpush1.msra.mxu0 %v2357
    %2359 = vmatprep.subr.mxu0 0.0
    %v2360 = vand.u32 %v1822, 4294901760
    %2361 = vmatpush1.msra.mxu0 %v2360
    %2362 = vmatprep.subr.mxu0 0.0
    %2363 = vmatpush1.msra.mxu0 0.0
    %2364 = vmatprep.subr.mxu0 0.0
    %2365 = vmatpush1.msra.mxu0 0.0
    %2366 = vmatprep.subr.mxu0 0.0
    %2367 = vmatpush1.msra.mxu0 0.0
    %2368 = vmatprep.subr.mxu0 0.0
    %2369 = vmatpush1.msra.mxu0 0.0
    %2370 = vmatprep.subr.mxu0 0.0
    %2371 = vmatpush1.msra.mxu0 0.0
    %2372 = vmatprep.subr.mxu0 0.0
    %2373 = vmatpush1.msra.mxu0 0.0
    %2374 = vmatprep.subr.mxu0 0.0
    %2375 = vmatpush1.msra.mxu0 0.0
    %2376 = vmatprep.subr.mxu0 0.0
    %2377 = vmatpush1.msra.mxu0 0.0
    %2378 = vmatprep.subr.mxu0 0.0
    %2379 = vmatpush1.msra.mxu0 0.0
    %2380 = vmatprep.subr.mxu0 0.0
    %2381 = vmatpush1.msra.mxu0 0.0
    %2382 = vmatprep.subr.mxu0 0.0
    %2383 = vmatpush1.msra.mxu0 0.0
    %2384 = vmatprep.subr.mxu0 0.0
    %2385 = vmatpush1.msra.mxu0 0.0
    %2386 = vmatprep.subr.mxu0 0.0
    %2387 = vmatpush1.msra.mxu0 0.0
    %2388 = vmatprep.subr.mxu0 0.0
    %2389 = vmatpush1.msra.mxu0 0.0
    %2390 = vmatprep.subr.mxu0 0.0
    %2391 = vmatpush1.msra.mxu0 0.0
    %2392 = vmatprep.subr.mxu0 0.0
    %2393 = vmatpush1.msra.mxu0 0.0
    %2394 = vmatprep.subr.mxu0 0.0
    %2395 = vmatpush1.msra.mxu0 0.0
    %2396 = vmatprep.subr.mxu0 0.0
    %2397 = vmatpush1.msra.mxu0 0.0
    %2398 = vmatprep.subr.mxu0 0.0
    %2399 = vmatpush1.msra.mxu0 0.0
    %2400 = vmatprep.subr.mxu0 0.0
    %2401 = vmatpush1.msra.mxu0 0.0
    %2402 = vmatprep.subr.mxu0 0.0
    %2403 = vmatpush1.msra.mxu0 0.0
    %2404 = vmatprep.subr.mxu0 0.0
    %2405 = vmatpush1.msra.mxu0 0.0
    %2406 = vmatprep.subr.mxu0 0.0
    %2407 = vmatpush1.msra.mxu0 0.0
    %2408 = vmatprep.subr.mxu0 0.0
    %2409 = vmatpush1.msra.mxu0 0.0
    %2410 = vmatprep.mubr.f32.mxu0 0.0
    %v2411 = vand.u32 %v1838, 4294901760
    %2412 = vmatmul.mubr.f32.gmra.mrb[0].mxu0 %v2411
    %v2413 = vpop.f32.mrb[0].mxu0
    %v2414 = vadd.f32 %v2329, %v2413
    %v2415 = vpop.f32.mrb[0].mxu0
    %2416 = vmatprep.mubr.f32.mxu0 0.0
    %v2417 = vand.u32 %v1841, 4294901760
    %2418 = vmatmul.mubr.f32.gmra.mrb[0].mxu0 %v2417
    %v2419 = vpop.f32.mrb[0].mxu0
    %v2420 = vadd.f32 %v2335, %v2419
    %v2421 = vpop.f32.mrb[0].mxu0
    %2422 = vdwg.mxu0
    %v2423 = vmul.f32 %v2414, %v2414
    %v2424 = vmul.f32 %v2420, %v2420
    %vm2425 = vcmask 64512
    %v2426 = vsel %vm2425, %v2423, 0.0
    %v2427 = vsel %vm2425, %v2424, 0.0
    %v2428 = vadd.f32 %v2426, %v2427
    %v2429 = vrot.slane %v2428, 4
    %v2430 = vadd.f32 %v2428, %v2429
    %v2431 = vrot.slane %v2430, 2
    %v2432 = vadd.f32 %v2430, %v2431
    %v2433 = vrot.slane %v2432, 1
    %v2434 = vadd.f32 %v2432, %v2433
    %v2435 = vrsqrt.pop %v2434
    %v2436 = vmul.f32 %v2434, %v2435
    %vm2437 = vcmp.eq.f32.partialorder %v2434, inf
    %v2438 = vsel %vm2437, %v2434, %v2436
    %vm2439 = vcmp.eq.f32.partialorder %v2434, 0.0
    %v2440 = vand.u32 %v2434, 2147483648
    %v2441 = vsel %vm2439, %v2440, %v2438
    %v2442 = vsub.f32 0.0, %v2441
    %vm2443 = vcmask 57344
    %2444 = vst.msk [vmem:[#allocation2] sm:$0x1] %vm2443, %v2442
    // Predicated region
    $region30: #{tpu_custom_call.1} parent=1 // pred_check
      _
    $region31: #{tpu_custom_call.1} parent=1 // pred_check_branch
      %2446 = sbr.rel (0) target = $region33
    $region32: #{tpu_custom_call.1} parent=1 // pred_region
      %s2448 = ssub.s32 16, 16
      %2449 = vsyncadd [#allocation3], %s2448
      %s2451 = sshll.u32 [#allocation2], 4
      %s2452 = int_to_ptr.vmem [resolvable:$true] %s2451
      %2454 = dma.vmem_to_hbm [thread:$0]  %s2452, 16, %s7, [#allocation3]
    $region33: #{tpu_custom_call.1} parent=1 // pred_fallthru
      _
    // Predicated region
    $region34: #{tpu_custom_call.1} parent=1 // pred_check
      _
    $region35: #{tpu_custom_call.1} parent=1 // pred_check_branch
      %2456 = sbr.rel (0) target = $region37
    $region36: #{tpu_custom_call.1} parent=1 // pred_region
      %2457 = dma.done [#allocation3], 16
    $region37: #{tpu_custom_call.1} parent=1 // pred_fallthru
      _
    %2458 = vsyncpa [#allocation3], 1

</llo_original>
